<compile_context>
chip_gen: v7x
topology: tpu7x:2x2x1
jax: 0.10.0
libtpu: 0.0.40
codegen_flags: <defaults>
</compile_context>

<pallas_src>
from collections import defaultdict

import numpy as np
import jax
import jax.numpy as jnp
from jax import lax
from jax.experimental import pallas as pl
from jax.experimental.pallas import tpu as pltpu


# ----------------------------------------------------------------------------
# Pallas layer: one DAGGRU layer, one direction per grid step.
# ----------------------------------------------------------------------------
def daggru_layer(x, wi, wh, bi, bh, level_ids, adjs, nlvl, ndir, L):
    """One DAGGRU layer; both directions fused into one pallas_call.

    x         : (N, D) float32 node features (shared by both directions)
    wi        : (ndir, 3, D, H) gate-major input weights   (gi_g = x @ wi[g])
    wh        : (ndir, 3, H, H) gate-major hidden weights
    bi, bh    : (ndir, 3, 1, H)
    level_ids : (ndir, N, 1) int32   topological level of each node, per dir
    adjs      : (ndir*L, N, N) bfloat16  adj[d*L+l, dst, src] = 1/deg(dst)
    nlvl      : (ndir,) int32 number of real levels per direction
    returns (N, ndir*H)  == torch.cat([h_fwd, h_bwd], dim=1)
    """
    x = jnp.asarray(x, jnp.float32)
    N, D = x.shape
    H = wi.shape[-1]

    def kernel(nlvl_ref,        # SMEM (ndir,) int32      (scalar prefetch)
               x_ref,           # VMEM (N, D) f32
               wi_ref,          # VMEM (1, 3, D, H) f32
               wh_ref,          # VMEM (1, 3, H, H) f32
               bi_ref,          # VMEM (1, 3, 1, H) f32
               bh_ref,          # VMEM (1, 3, 1, H) f32
               lvl_ref,         # VMEM (1, N, 1) int32    level id per node
               adj_hbm,         # ANY  (ndir*L, N, N) bf16 (streamed manually)
               out_ref,         # VMEM (1, N, H) f32
               adj_buf,         # VMEM (2, N, N) bf16     double buffer
               adj_sem):        # DMA semaphores (2,)
        d = pl.program_id(0)
        n_lvl = nlvl_ref[d]
        base = d * L

        # Prime the DMA for this direction's level-0 adjacency.
        pltpu.make_async_copy(adj_hbm.at[base], adj_buf.at[0],
                              adj_sem.at[0]).start()

        # Hoisted, gate-major input projection (once per direction, not per
        # level).  Loop-invariant values are loaded/computed outside the loop.
        xv = x_ref[...]
        gi_r = jnp.dot(xv, wi_ref[0, 0],
                       preferred_element_type=jnp.float32) + bi_ref[0, 0]
        gi_z = jnp.dot(xv, wi_ref[0, 1],
                       preferred_element_type=jnp.float32) + bi_ref[0, 1]
        gi_n = jnp.dot(xv, wi_ref[0, 2],
                       preferred_element_type=jnp.float32) + bi_ref[0, 2]
        wh_r, wh_z, wh_n = wh_ref[0, 0], wh_ref[0, 1], wh_ref[0, 2]
        bh_r, bh_z, bh_n = bh_ref[0, 0], bh_ref[0, 1], bh_ref[0, 2]
        lvl_ids = lvl_ref[0]                                    # (N, 1) int32

        def level_body(lvl, carry):
            h, msg = carry                                      # (N, H) each
            slot = lax.rem(lvl, 2)

            # Wait for this level's adjacency; prefetch next level's while
            # computing this one.
            pltpu.make_async_copy(adj_hbm.at[base], adj_buf.at[slot],
                                  adj_sem.at[slot]).wait()

            @pl.when(lvl + 1 < n_lvl)
            def _():
                pltpu.make_async_copy(adj_hbm.at[base + lvl + 1],
                                      adj_buf.at[1 - slot],
                                      adj_sem.at[1 - slot]).start()

            # GRU cell: hx = msg (1/deg already folded into adj).
            gh_r = jnp.dot(msg, wh_r, preferred_element_type=jnp.float32) + bh_r
            gh_z = jnp.dot(msg, wh_z, preferred_element_type=jnp.float32) + bh_z
            gh_n = jnp.dot(msg, wh_n, preferred_element_type=jnp.float32) + bh_n
            r = jax.nn.sigmoid(gi_r + gh_r)
            z = jax.nn.sigmoid(gi_z + gh_z)
            n = jnp.tanh(gi_n + r * gh_n)
            node_h = (1.0 - z) * n + z * msg                    # (N, H)

            # Masked update: rows updated at this level were zero before.
            m = (lvl_ids == lvl).astype(jnp.float32)            # (N, 1)
            h = h + m * node_h

            # Message passing: msg[dst] += (1/deg[dst]) * sum h[src in level].
            msg = msg + jnp.dot(adj_buf[slot], h.astype(jnp.bfloat16),
                                preferred_element_type=jnp.float32)
            return h, msg

        zeros = jnp.zeros((N, H), jnp.float32)
        h, _ = lax.fori_loop(0, n_lvl, level_body, (zeros, zeros))
        out_ref[0] = h

    grid_spec = pltpu.PrefetchScalarGridSpec(
        num_scalar_prefetch=1,               # nlvl -> SMEM
        grid=(ndir,),
        in_specs=[
            pl.BlockSpec((N, D), lambda d, nl: (0, 0)),            # x (shared)
            pl.BlockSpec((1, 3, D, H), lambda d, nl: (d, 0, 0, 0)),  # wi
            pl.BlockSpec((1, 3, H, H), lambda d, nl: (d, 0, 0, 0)),  # wh
            pl.BlockSpec((1, 3, 1, H), lambda d, nl: (d, 0, 0, 0)),  # bi
            pl.BlockSpec((1, 3, 1, H), lambda d, nl: (d, 0, 0, 0)),  # bh
            pl.BlockSpec((1, N, 1), lambda d, nl: (d, 0, 0)),        # level ids
            pl.BlockSpec(memory_space=pl.ANY),                       # adj (HBM)
        ],
        out_specs=pl.BlockSpec((1, N, H), lambda d, nl: (d, 0, 0)),
        scratch_shapes=[
            pltpu.VMEM((2, N, N), jnp.bfloat16),   # streamed adjacency
            pltpu.SemaphoreType.DMA((2,)),
        ],
    )

    out = pl.pallas_call(
        kernel,
        out_shape=jax.ShapeDtypeStruct((ndir, N, H), jnp.float32),
        grid_spec=grid_spec,
        compiler_params=pltpu.CompilerParams(
            # direction axis is independent -> parallel (2 TCs on v7x)
            dimension_semantics=("parallel",),
            # streamed-adj design keeps VMEM small; explicit budget fits the
            # 64 MiB/TC of v7x as well as v5e/v6e.
            vmem_limit_bytes=48 * 1024 * 1024,
        ),
    )(nlvl, x, wi, wh, bi, bh, level_ids, adjs)

    # NOTE: a lane-dense (N, ndir*H) out_spec with an (N, H) block is illegal
    # at H=32 (block last dim neither 128-multiple nor full), so each
    # direction writes its own (N, H) slab and we concatenate here.
    return jnp.transpose(out, (1, 0, 2)).reshape(N, ndir * H)


def daggru_forward(features, params, level_ids, adjs, nlvl, layer_num,
                   bidirectional, L):
    h = jnp.asarray(features, jnp.float32)
    dirs = ["forward", "backward"] if bidirectional else ["forward"]
    ndir = len(dirs)
    level_ids = jnp.asarray(level_ids, jnp.int32)
    adjs = jnp.asarray(adjs, jnp.bfloat16)       # bf16 storage for the big one
    nlvl = jnp.asarray(nlvl, jnp.int32)
    for li in range(layer_num):
        cells = [params[d][li] for d in dirs]
        H = np.asarray(cells[0]["w_hh"]).shape[1]
        # PyTorch GRUCell layout: w_ih (3H, Din), rows ordered [r; z; n].
        # Re-pack gate-major: (3, Din, H) so x @ wi[g] == x @ W_ig^T.
        wi = jnp.stack([jnp.transpose(jnp.asarray(c["w_ih"]).reshape(3, H, -1),
                                      (0, 2, 1)) for c in cells])
        wh = jnp.stack([jnp.transpose(jnp.asarray(c["w_hh"]).reshape(3, H, H),
                                      (0, 2, 1)) for c in cells])
        bi = jnp.stack([jnp.asarray(c["b_ih"]).reshape(3, 1, H) for c in cells])
        bh = jnp.stack([jnp.asarray(c["b_hh"]).reshape(3, 1, H) for c in cells])
        h = daggru_layer(h, wi, wh, bi, bh, level_ids, adjs, nlvl, ndir, L)
    return h


# ----------------------------------------------------------------------------
# Host-side glue: synthetic DAG, topological levels, per-level arrays.
# (Corresponds to the DGL preprocessing in the PyTorch module.)
# ----------------------------------------------------------------------------
def make_dag(n_nodes, seed=0):
    rng = np.random.RandomState(seed)
    edges = set()
    for i in range(n_nodes):
        for j in range(i + 1, n_nodes):
            if rng.rand() < 0.25:
                edges.add((i, j))
    for i in range(n_nodes - 1):          # sprinkle chain edges for connectivity
        if rng.rand() < 0.5:
            edges.add((i, i + 1))
    return sorted(edges)


def topo_levels(n, edges):
    indeg = np.zeros(n, dtype=np.int64)
    adj = defaultdict(list)
    for s, d in edges:
        adj[s].append(d)
        indeg[d] += 1
    levels = []
    cur = [i for i in range(n) if indeg[i] == 0]
    rem = indeg.copy()
    while cur:
        levels.append(sorted(cur))
        nxt = []
        for u in cur:
            for v in adj[u]:
                rem[v] -= 1
                if rem[v] == 0:
                    nxt.append(v)
        cur = nxt
    return levels, adj


def build_direction_arrays(n, edges, levels, divide_in_degree, message_passing):
    """Per-node level ids + inv-degree-scaled level adjacency for one direction."""
    L = len(levels)
    level_ids = np.zeros((n, 1), dtype=np.int32)
    adj = np.zeros((L, n, n), dtype=np.float32)
    seen = np.zeros(n, dtype=bool)
    level_of = {}
    for l, nodes in enumerate(levels):
        for u in nodes:
            assert not seen[u], "node appears in more than one level (not a DAG?)"
            seen[u] = True
            level_ids[u, 0] = l
            level_of[u] = l
    assert seen.all(), "every node must appear in exactly one topological level"
    indeg = np.zeros((n, 1), dtype=np.float32)
    for s, d in edges:
        indeg[d, 0] += 1.0
    # Fold 1/degree into the adjacency.  Division of the accumulated message
    # is linear, and level-0 nodes receive no messages, so this exactly
    # reproduces torch's "skip first batch" + divide semantics.
    inv = (1.0 / np.maximum(indeg, 1.0)) if divide_in_degree else np.ones_like(indeg)
    if message_passing:
        for s, d in edges:
            adj[level_of[s], d, s] += inv[d, 0]
    return level_ids, adj, indeg


def stack_directions(lvl_list, adj_list):
    """Pad adjacencies to a common level count, stack per-direction arrays."""
    Lmax = max(a.shape[0] for a in adj_list)
    nlvl = np.array([a.shape[0] for a in adj_list], dtype=np.int32)
    adjs = []
    for a in adj_list:
        pad = Lmax - a.shape[0]
        if pad:
            a = np.concatenate([a, np.zeros((pad,) + a.shape[1:], a.dtype)], axis=0)
        adjs.append(a)
    level_ids = np.stack(lvl_list, axis=0)          # (ndir, N, 1)
    return level_ids, np.concatenate(adjs, axis=0), nlvl, Lmax


# ----------------------------------------------------------------------------
# Parameters (PyTorch nn.GRUCell-style init, deterministic).
# ----------------------------------------------------------------------------
def init_gru_cell(key, in_dim, hidden):
    k = 1.0 / np.sqrt(hidden)
    k1, k2, k3, k4 = jax.random.split(key, 4)
    return dict(
        w_ih=jax.random.uniform(k1, (3 * hidden, in_dim), jnp.float32, -k, k),
        w_hh=jax.random.uniform(k2, (3 * hidden, hidden), jnp.float32, -k, k),
        b_ih=jax.random.uniform(k3, (3 * hidden,), jnp.float32, -k, k),
        b_hh=jax.random.uniform(k4, (3 * hidden,), jnp.float32, -k, k),
    )


def make_params(key, in_dim, hidden_dim, layer_num, bidirectional):
    H = hidden_dim // (2 if bidirectional else 1)
    dirs = ["forward"] + (["backward"] if bidirectional else [])
    params = {d: [] for d in dirs}
    for d in dirs:
        for li in range(layer_num):
            d_in = in_dim if li == 0 else H * (2 if bidirectional else 1)
            key, sub = jax.random.split(key)
            params[d].append(init_gru_cell(sub, d_in, H))
    return params


# ----------------------------------------------------------------------------
# Pure NumPy reference (mirrors the PyTorch forward loop exactly).
# ----------------------------------------------------------------------------
def _sigmoid(v):
    return 1.0 / (1.0 + np.exp(-v))


def gru_cell_ref(x, hx, cell):
    w_ih = np.asarray(cell["w_ih"], np.float64)
    w_hh = np.asarray(cell["w_hh"], np.float64)
    b_ih = np.asarray(cell["b_ih"], np.float64)
    b_hh = np.asarray(cell["b_hh"], np.float64)
    H = w_hh.shape[1]
    gi = x @ w_ih.T + b_ih
    gh = hx @ w_hh.T + b_hh
    r = _sigmoid(gi[:, :H] + gh[:, :H])
    z = _sigmoid(gi[:, H:2 * H] + gh[:, H:2 * H])
    n = np.tanh(gi[:, 2 * H:] + r * gh[:, 2 * H:])
    return (1.0 - z) * n + z * hx


def layer_ref(levels, adj_list, indeg, features, cell, H,
              divide_in_degree=True, message_passing=True):
    N = features.shape[0]
    last_hidden = np.zeros((N, H), dtype=np.float64)
    h = np.zeros((N, H), dtype=np.float64)
    first_batch_skipped = False
    for nodes in levels:
        nodes = np.asarray(nodes)
        nlh = last_hidden[nodes].copy()
        nx = features[nodes]
        if first_batch_skipped and divide_in_degree:
            nlh = nlh / indeg[nodes]
        else:
            first_batch_skipped = True
        nh = gru_cell_ref(nx, nlh, cell)
        h[nodes] = nh
        if message_passing:
            for src in nodes:
                for dst in adj_list[src]:
                    last_hidden[dst] += h[src]
    return h


def daggru_ref(features, params, fwd_info, bwd_info, layer_num, bidirectional, H):
    h = np.asarray(features, np.float64)
    for li in range(layer_num):
        hf = layer_ref(*fwd_info, h, params["forward"][li], H)
        if bidirectional:
            hb = layer_ref(*bwd_info, h, params["backward"][li], H)
            h = np.concatenate([hf, hb], axis=1)
        else:
            h = hf
    return h


# ----------------------------------------------------------------------------
if __name__ == "__main__":
    # config (small, consistent with module semantics)
    N_NODES = 16
    IN_DIM = 32
    HIDDEN_DIM = 64
    LAYER_NUM = 2
    BIDIRECTIONAL = True
    DIVIDE_IN_DEGREE = True
    MESSAGE_PASSING = True
    H = HIDDEN_DIM // (2 if BIDIRECTIONAL else 1)

    # synthetic DAG + topological-level preprocessing (host-side glue)
    edges = make_dag(N_NODES, seed=0)
    edges_rev = [(d, s) for (s, d) in edges]
    levels_fwd, adjlist_fwd = topo_levels(N_NODES, edges)
    levels_bwd, adjlist_bwd = topo_levels(N_NODES, edges_rev)

    lvl_f, adj_f, indeg_f = build_direction_arrays(
        N_NODES, edges, levels_fwd, DIVIDE_IN_DEGREE, MESSAGE_PASSING)
    lvl_b, adj_b, indeg_b = build_direction_arrays(
        N_NODES, edges_rev, levels_bwd, DIVIDE_IN_DEGREE, MESSAGE_PASSING)

    if BIDIRECTIONAL:
        level_ids, adjs, nlvl, Lmax = stack_directions([lvl_f, lvl_b],
                                                       [adj_f, adj_b])
    else:
        level_ids, adjs, nlvl, Lmax = stack_directions([lvl_f], [adj_f])

    # deterministic params + inputs
    key = jax.random.PRNGKey(0)
    kp, kx = jax.random.split(key)
    params = make_params(kp, IN_DIM, HIDDEN_DIM, LAYER_NUM, BIDIRECTIONAL)
    features = jax.random.normal(kx, (N_NODES, IN_DIM), jnp.float32)

    # Pallas forward
    out = daggru_forward(features, params, level_ids, adjs, nlvl,
                         LAYER_NUM, BIDIRECTIONAL, Lmax)
    out = jax.block_until_ready(out)

    # NumPy reference (mirrors the PyTorch loop)
    ref = daggru_ref(
        np.asarray(features), params,
        (levels_fwd, adjlist_fwd, indeg_f),
        (levels_bwd, adjlist_bwd, indeg_b),
        LAYER_NUM, BIDIRECTIONAL, H)

    # Tolerance accounts for default-precision (bf16-mantissa MXU, f32 accum)
    # matmuls and bf16 adjacency storage over two stacked recurrent layers.
    np.testing.assert_allclose(np.asarray(out), ref, rtol=3e-2, atol=3e-2)
    print("KERNEL_OK")
</pallas_src>

<mosaic_0001>
module attributes {stable_mosaic.version = 11 : i64} {
  func.func @kernel(%arg0: i32, %arg1: memref<2xi32, #tpu.memory_space<smem>>, %arg2: memref<16x32xf32, #tpu.memory_space<vmem>>, %arg3: memref<1x3x32x32xf32, #tpu.memory_space<vmem>>, %arg4: memref<1x3x32x32xf32, #tpu.memory_space<vmem>>, %arg5: memref<1x3x1x32xf32, #tpu.memory_space<vmem>>, %arg6: memref<1x3x1x32xf32, #tpu.memory_space<vmem>>, %arg7: memref<1x16x1xi32, #tpu.memory_space<vmem>>, %arg8: memref<14x16x16xbf16, #tpu.memory_space<any>>, %arg9: memref<1x16x32xf32, #tpu.memory_space<vmem>>, %arg10: memref<2x16x16xbf16, #tpu.memory_space<vmem>>, %arg11: memref<2x!tpu.dma_semaphore, #tpu.memory_space<semaphore_mem>>) attributes {dimension_semantics = [#tpu.dimension_semantics<parallel>], iteration_bounds = array<i64: 2>, scalar_prefetch = 1 : i64, scratch_operands = 2 : i64, tpu.core_type = #tpu.core_type<tc>, window_params = [{pipeline_mode = #tpu.pipeline_mode<synchronous>, transform_indices = @transform_0, window_bounds = array<i64: 16, 32>}, {transform_indices = @transform_1, window_bounds = array<i64: 1, 3, 32, 32>}, {transform_indices = @transform_2, window_bounds = array<i64: 1, 3, 32, 32>}, {transform_indices = @transform_3, window_bounds = array<i64: 1, 3, 1, 32>}, {transform_indices = @transform_4, window_bounds = array<i64: 1, 3, 1, 32>}, {transform_indices = @transform_5, window_bounds = array<i64: 1, 16, 1>}, {}, {transform_indices = @transform_7, window_bounds = array<i64: 1, 16, 32>}]} {
    %0 = arith.index_cast %arg0 : i32 to index
    %1 = memref.load %arg1[%0] : memref<2xi32, #tpu.memory_space<smem>>
    %c7_i32 = arith.constant 7 : i32
    %2 = arith.muli %arg0, %c7_i32 : i32
    %c0_i32 = arith.constant 0 : i32
    %c0_i32_0 = arith.constant 0 : i32
    %c0_i32_1 = arith.constant 0 : i32
    %c0_i32_2 = arith.constant 0 : i32
    %3 = tpu.memref_slice %arg8[%2, %c0_i32_1, %c0_i32_2] : memref<14x16x16xbf16, #tpu.memory_space<any>> -> memref<1x16x16xbf16, #tpu.memory_space<any>>
    %4 = tpu.memref_squeeze %3 : memref<1x16x16xbf16, #tpu.memory_space<any>> -> memref<16x16xbf16, #tpu.memory_space<any>>
    %c0_i32_3 = arith.constant 0 : i32
    %c0_i32_4 = arith.constant 0 : i32
    %5 = tpu.memref_slice %arg10[%c0_i32, %c0_i32_3, %c0_i32_4] : memref<2x16x16xbf16, #tpu.memory_space<vmem>> -> memref<1x16x16xbf16, #tpu.memory_space<vmem>>
    %6 = tpu.memref_squeeze %5 : memref<1x16x16xbf16, #tpu.memory_space<vmem>> -> memref<16x16xbf16, #tpu.memory_space<vmem>>
    %7 = tpu.memref_slice %arg11[%c0_i32_0] : memref<2x!tpu.dma_semaphore, #tpu.memory_space<semaphore_mem>> -> memref<1x!tpu.dma_semaphore, #tpu.memory_space<semaphore_mem>>
    %8 = tpu.memref_squeeze %7 : memref<1x!tpu.dma_semaphore, #tpu.memory_space<semaphore_mem>> -> memref<!tpu.dma_semaphore, #tpu.memory_space<semaphore_mem>>
    tpu.enqueue_dma source(%4 : memref<16x16xbf16, #tpu.memory_space<any>>) target(%6 : memref<16x16xbf16, #tpu.memory_space<vmem>>) target_semaphore(%8 : memref<!tpu.dma_semaphore, #tpu.memory_space<semaphore_mem>>)
    %c0 = arith.constant 0 : index
    %c0_5 = arith.constant 0 : index
    %9 = vector.load %arg2[%c0, %c0_5] : memref<16x32xf32, #tpu.memory_space<vmem>>, vector<16x32xf32>
    %c0_6 = arith.constant 0 : index
    %c0_7 = arith.constant 0 : index
    %c0_8 = arith.constant 0 : index
    %c0_9 = arith.constant 0 : index
    %10 = vector.load %arg3[%c0_6, %c0_7, %c0_8, %c0_9] : memref<1x3x32x32xf32, #tpu.memory_space<vmem>>, vector<1x1x32x32xf32>
    %11 = vector.shape_cast %10 : vector<1x1x32x32xf32> to vector<32x32xf32>
    %cst = arith.constant dense<0.000000e+00> : vector<16x32xf32>
    %12 = tpu.matmul %9, %11, %cst {dimension_numbers = #tpu.dot_dimension_numbers<[1], [0], [0], [1], [0, 0, 1, 1], [], []>} : vector<16x32xf32>, vector<32x32xf32>, vector<16x32xf32> -> vector<16x32xf32>
    %c0_10 = arith.constant 0 : index
    %c0_11 = arith.constant 0 : index
    %c0_12 = arith.constant 0 : index
    %c0_13 = arith.constant 0 : index
    %13 = vector.load %arg5[%c0_10, %c0_11, %c0_12, %c0_13] : memref<1x3x1x32xf32, #tpu.memory_space<vmem>>, vector<1x1x1x32xf32>
    %14 = vector.shape_cast %13 : vector<1x1x1x32xf32> to vector<1x32xf32>
    %15 = vector.broadcast %14 : vector<1x32xf32> to vector<16x32xf32>
    %16 = arith.addf %12, %15 : vector<16x32xf32>
    %c0_14 = arith.constant 0 : index
    %c1 = arith.constant 1 : index
    %c0_15 = arith.constant 0 : index
    %c0_16 = arith.constant 0 : index
    %17 = vector.load %arg3[%c0_14, %c1, %c0_15, %c0_16] : memref<1x3x32x32xf32, #tpu.memory_space<vmem>>, vector<1x1x32x32xf32>
    %18 = vector.shape_cast %17 : vector<1x1x32x32xf32> to vector<32x32xf32>
    %cst_17 = arith.constant dense<0.000000e+00> : vector<16x32xf32>
    %19 = tpu.matmul %9, %18, %cst_17 {dimension_numbers = #tpu.dot_dimension_numbers<[1], [0], [0], [1], [0, 0, 1, 1], [], []>} : vector<16x32xf32>, vector<32x32xf32>, vector<16x32xf32> -> vector<16x32xf32>
    %c0_18 = arith.constant 0 : index
    %c1_19 = arith.constant 1 : index
    %c0_20 = arith.constant 0 : index
    %c0_21 = arith.constant 0 : index
    %20 = vector.load %arg5[%c0_18, %c1_19, %c0_20, %c0_21] : memref<1x3x1x32xf32, #tpu.memory_space<vmem>>, vector<1x1x1x32xf32>
    %21 = vector.shape_cast %20 : vector<1x1x1x32xf32> to vector<1x32xf32>
    %22 = vector.broadcast %21 : vector<1x32xf32> to vector<16x32xf32>
    %23 = arith.addf %19, %22 : vector<16x32xf32>
    %c0_22 = arith.constant 0 : index
    %c2 = arith.constant 2 : index
    %c0_23 = arith.constant 0 : index
    %c0_24 = arith.constant 0 : index
    %24 = vector.load %arg3[%c0_22, %c2, %c0_23, %c0_24] : memref<1x3x32x32xf32, #tpu.memory_space<vmem>>, vector<1x1x32x32xf32>
    %25 = vector.shape_cast %24 : vector<1x1x32x32xf32> to vector<32x32xf32>
    %cst_25 = arith.constant dense<0.000000e+00> : vector<16x32xf32>
    %26 = tpu.matmul %9, %25, %cst_25 {dimension_numbers = #tpu.dot_dimension_numbers<[1], [0], [0], [1], [0, 0, 1, 1], [], []>} : vector<16x32xf32>, vector<32x32xf32>, vector<16x32xf32> -> vector<16x32xf32>
    %c0_26 = arith.constant 0 : index
    %c2_27 = arith.constant 2 : index
    %c0_28 = arith.constant 0 : index
    %c0_29 = arith.constant 0 : index
    %27 = vector.load %arg5[%c0_26, %c2_27, %c0_28, %c0_29] : memref<1x3x1x32xf32, #tpu.memory_space<vmem>>, vector<1x1x1x32xf32>
    %28 = vector.shape_cast %27 : vector<1x1x1x32xf32> to vector<1x32xf32>
    %29 = vector.broadcast %28 : vector<1x32xf32> to vector<16x32xf32>
    %30 = arith.addf %26, %29 : vector<16x32xf32>
    %c0_30 = arith.constant 0 : index
    %c0_31 = arith.constant 0 : index
    %c0_32 = arith.constant 0 : index
    %c0_33 = arith.constant 0 : index
    %31 = vector.load %arg4[%c0_30, %c0_31, %c0_32, %c0_33] : memref<1x3x32x32xf32, #tpu.memory_space<vmem>>, vector<1x1x32x32xf32>
    %32 = vector.shape_cast %31 : vector<1x1x32x32xf32> to vector<32x32xf32>
    %c0_34 = arith.constant 0 : index
    %c1_35 = arith.constant 1 : index
    %c0_36 = arith.constant 0 : index
    %c0_37 = arith.constant 0 : index
    %33 = vector.load %arg4[%c0_34, %c1_35, %c0_36, %c0_37] : memref<1x3x32x32xf32, #tpu.memory_space<vmem>>, vector<1x1x32x32xf32>
    %34 = vector.shape_cast %33 : vector<1x1x32x32xf32> to vector<32x32xf32>
    %c0_38 = arith.constant 0 : index
    %c2_39 = arith.constant 2 : index
    %c0_40 = arith.constant 0 : index
    %c0_41 = arith.constant 0 : index
    %35 = vector.load %arg4[%c0_38, %c2_39, %c0_40, %c0_41] : memref<1x3x32x32xf32, #tpu.memory_space<vmem>>, vector<1x1x32x32xf32>
    %36 = vector.shape_cast %35 : vector<1x1x32x32xf32> to vector<32x32xf32>
    %c0_42 = arith.constant 0 : index
    %c0_43 = arith.constant 0 : index
    %c0_44 = arith.constant 0 : index
    %c0_45 = arith.constant 0 : index
    %37 = vector.load %arg6[%c0_42, %c0_43, %c0_44, %c0_45] : memref<1x3x1x32xf32, #tpu.memory_space<vmem>>, vector<1x1x1x32xf32>
    %38 = vector.shape_cast %37 : vector<1x1x1x32xf32> to vector<1x32xf32>
    %c0_46 = arith.constant 0 : index
    %c1_47 = arith.constant 1 : index
    %c0_48 = arith.constant 0 : index
    %c0_49 = arith.constant 0 : index
    %39 = vector.load %arg6[%c0_46, %c1_47, %c0_48, %c0_49] : memref<1x3x1x32xf32, #tpu.memory_space<vmem>>, vector<1x1x1x32xf32>
    %40 = vector.shape_cast %39 : vector<1x1x1x32xf32> to vector<1x32xf32>
    %c0_50 = arith.constant 0 : index
    %c2_51 = arith.constant 2 : index
    %c0_52 = arith.constant 0 : index
    %c0_53 = arith.constant 0 : index
    %41 = vector.load %arg6[%c0_50, %c2_51, %c0_52, %c0_53] : memref<1x3x1x32xf32, #tpu.memory_space<vmem>>, vector<1x1x1x32xf32>
    %42 = vector.shape_cast %41 : vector<1x1x1x32xf32> to vector<1x32xf32>
    %c0_54 = arith.constant 0 : index
    %c0_55 = arith.constant 0 : index
    %c0_56 = arith.constant 0 : index
    %43 = vector.load %arg7[%c0_54, %c0_55, %c0_56] : memref<1x16x1xi32, #tpu.memory_space<vmem>>, vector<1x16x1xi32>
    %44 = vector.shape_cast %43 : vector<1x16x1xi32> to vector<16x1xi32>
    %cst_57 = arith.constant 0.000000e+00 : f32
    %45 = vector.broadcast %cst_57 : f32 to vector<16x32xf32>
    %c0_i32_58 = arith.constant 0 : i32
    %46 = arith.subi %1, %c0_i32_58 : i32
    %47 = arith.addi %c0_i32_58, %46 : i32
    %c1_i32 = arith.constant 1 : i32
    %48:2 = scf.for %arg12 = %c0_i32_58 to %47 step %c1_i32 iter_args(%arg13 = %45, %arg14 = %45) -> (vector<16x32xf32>, vector<16x32xf32>)  : i32 {
      %c2_i32 = arith.constant 2 : i32
      %52 = arith.remsi %arg12, %c2_i32 : i32
      %c0_i32_62 = arith.constant 0 : i32
      %c0_i32_63 = arith.constant 0 : i32
      %53 = tpu.memref_slice %arg8[%2, %c0_i32_62, %c0_i32_63] : memref<14x16x16xbf16, #tpu.memory_space<any>> -> memref<1x16x16xbf16, #tpu.memory_space<any>>
      %54 = tpu.memref_squeeze %53 : memref<1x16x16xbf16, #tpu.memory_space<any>> -> memref<16x16xbf16, #tpu.memory_space<any>>
      %c0_i32_64 = arith.constant 0 : i32
      %c0_i32_65 = arith.constant 0 : i32
      %55 = tpu.memref_slice %arg10[%52, %c0_i32_64, %c0_i32_65] : memref<2x16x16xbf16, #tpu.memory_space<vmem>> -> memref<1x16x16xbf16, #tpu.memory_space<vmem>>
      %56 = tpu.memref_squeeze %55 : memref<1x16x16xbf16, #tpu.memory_space<vmem>> -> memref<16x16xbf16, #tpu.memory_space<vmem>>
      %57 = tpu.memref_slice %arg11[%52] : memref<2x!tpu.dma_semaphore, #tpu.memory_space<semaphore_mem>> -> memref<1x!tpu.dma_semaphore, #tpu.memory_space<semaphore_mem>>
      %58 = tpu.memref_squeeze %57 : memref<1x!tpu.dma_semaphore, #tpu.memory_space<semaphore_mem>> -> memref<!tpu.dma_semaphore, #tpu.memory_space<semaphore_mem>>
      tpu.wait_dma2 semaphore(%58 : memref<!tpu.dma_semaphore, #tpu.memory_space<semaphore_mem>>) src(%54 : memref<16x16xbf16, #tpu.memory_space<any>>) dst(%56 : memref<16x16xbf16, #tpu.memory_space<vmem>>)
      %c1_i32_66 = arith.constant 1 : i32
      %59 = arith.addi %arg12, %c1_i32_66 : i32
      %60 = arith.cmpi slt, %59, %1 : i32
      %61 = arith.extui %60 : i1 to i32
      %c0_i32_67 = arith.constant 0 : i32
      %62 = arith.cmpi ne, %61, %c0_i32_67 : i32
      scf.if %62 {
        %105 = arith.addi %2, %arg12 : i32
        %c1_i32_77 = arith.constant 1 : i32
        %106 = arith.addi %105, %c1_i32_77 : i32
        %c1_i32_78 = arith.constant 1 : i32
        %107 = arith.subi %c1_i32_78, %52 : i32
        %c1_i32_79 = arith.constant 1 : i32
        %108 = arith.subi %c1_i32_79, %52 : i32
        %c0_i32_80 = arith.constant 0 : i32
        %c0_i32_81 = arith.constant 0 : i32
        %109 = tpu.memref_slice %arg8[%106, %c0_i32_80, %c0_i32_81] : memref<14x16x16xbf16, #tpu.memory_space<any>> -> memref<1x16x16xbf16, #tpu.memory_space<any>>
        %110 = tpu.memref_squeeze %109 : memref<1x16x16xbf16, #tpu.memory_space<any>> -> memref<16x16xbf16, #tpu.memory_space<any>>
        %c0_i32_82 = arith.constant 0 : i32
        %c0_i32_83 = arith.constant 0 : i32
        %111 = tpu.memref_slice %arg10[%107, %c0_i32_82, %c0_i32_83] : memref<2x16x16xbf16, #tpu.memory_space<vmem>> -> memref<1x16x16xbf16, #tpu.memory_space<vmem>>
        %112 = tpu.memref_squeeze %111 : memref<1x16x16xbf16, #tpu.memory_space<vmem>> -> memref<16x16xbf16, #tpu.memory_space<vmem>>
        %113 = tpu.memref_slice %arg11[%108] : memref<2x!tpu.dma_semaphore, #tpu.memory_space<semaphore_mem>> -> memref<1x!tpu.dma_semaphore, #tpu.memory_space<semaphore_mem>>
        %114 = tpu.memref_squeeze %113 : memref<1x!tpu.dma_semaphore, #tpu.memory_space<semaphore_mem>> -> memref<!tpu.dma_semaphore, #tpu.memory_space<semaphore_mem>>
        tpu.enqueue_dma source(%110 : memref<16x16xbf16, #tpu.memory_space<any>>) target(%112 : memref<16x16xbf16, #tpu.memory_space<vmem>>) target_semaphore(%114 : memref<!tpu.dma_semaphore, #tpu.memory_space<semaphore_mem>>)
      } else {
      }
      %cst_68 = arith.constant dense<0.000000e+00> : vector<16x32xf32>
      %63 = tpu.matmul %arg14, %32, %cst_68 {dimension_numbers = #tpu.dot_dimension_numbers<[1], [0], [0], [1], [0, 0, 1, 1], [], []>} : vector<16x32xf32>, vector<32x32xf32>, vector<16x32xf32> -> vector<16x32xf32>
      %64 = vector.broadcast %38 : vector<1x32xf32> to vector<16x32xf32>
      %65 = arith.addf %63, %64 : vector<16x32xf32>
      %cst_69 = arith.constant dense<0.000000e+00> : vector<16x32xf32>
      %66 = tpu.matmul %arg14, %34, %cst_69 {dimension_numbers = #tpu.dot_dimension_numbers<[1], [0], [0], [1], [0, 0, 1, 1], [], []>} : vector<16x32xf32>, vector<32x32xf32>, vector<16x32xf32> -> vector<16x32xf32>
      %67 = vector.broadcast %40 : vector<1x32xf32> to vector<16x32xf32>
      %68 = arith.addf %66, %67 : vector<16x32xf32>
      %cst_70 = arith.constant dense<0.000000e+00> : vector<16x32xf32>
      %69 = tpu.matmul %arg14, %36, %cst_70 {dimension_numbers = #tpu.dot_dimension_numbers<[1], [0], [0], [1], [0, 0, 1, 1], [], []>} : vector<16x32xf32>, vector<32x32xf32>, vector<16x32xf32> -> vector<16x32xf32>
      %70 = vector.broadcast %42 : vector<1x32xf32> to vector<16x32xf32>
      %71 = arith.addf %69, %70 : vector<16x32xf32>
      %72 = arith.addf %16, %65 : vector<16x32xf32>
      %73 = arith.negf %72 : vector<16x32xf32>
      %74 = math.exp %73 : vector<16x32xf32>
      %cst_71 = arith.constant 1.000000e+00 : f32
      %75 = vector.broadcast %cst_71 : f32 to vector<16x32xf32>
      %76 = arith.addf %75, %74 : vector<16x32xf32>
      %77 = arith.divf %75, %76 : vector<16x32xf32>
      %78 = arith.addf %23, %68 : vector<16x32xf32>
      %79 = arith.negf %78 : vector<16x32xf32>
      %80 = math.exp %79 : vector<16x32xf32>
      %cst_72 = arith.constant 1.000000e+00 : f32
      %81 = vector.broadcast %cst_72 : f32 to vector<16x32xf32>
      %82 = arith.addf %81, %80 : vector<16x32xf32>
      %83 = arith.divf %81, %82 : vector<16x32xf32>
      %84 = arith.mulf %77, %71 : vector<16x32xf32>
      %85 = arith.addf %30, %84 : vector<16x32xf32>
      %86 = math.tanh %85 : vector<16x32xf32>
      %cst_73 = arith.constant 1.000000e+00 : f32
      %87 = vector.broadcast %cst_73 : f32 to vector<16x32xf32>
      %88 = arith.subf %87, %83 : vector<16x32xf32>
      %89 = arith.mulf %88, %86 : vector<16x32xf32>
      %90 = arith.mulf %83, %arg14 : vector<16x32xf32>
      %91 = arith.addf %89, %90 : vector<16x32xf32>
      %92 = vector.broadcast %arg12 : i32 to vector<16x1xi32>
      %93 = arith.cmpi eq, %44, %92 : vector<16x1xi32>
      %94 = arith.extui %93 : vector<16x1xi1> to vector<16x1xi32>
      %95 = arith.sitofp %94 : vector<16x1xi32> to vector<16x1xf32>
      %96 = vector.broadcast %95 : vector<16x1xf32> to vector<16x32xf32>
      %97 = arith.mulf %96, %91 : vector<16x32xf32>
      %98 = arith.addf %arg13, %97 : vector<16x32xf32>
      %99 = arith.index_cast %52 : i32 to index
      %c0_74 = arith.constant 0 : index
      %c0_75 = arith.constant 0 : index
      %100 = vector.load %arg10[%99, %c0_74, %c0_75] : memref<2x16x16xbf16, #tpu.memory_space<vmem>>, vector<1x16x16xbf16>
      %101 = vector.shape_cast %100 : vector<1x16x16xbf16> to vector<16x16xbf16>
      %102 = arith.truncf %98 : vector<16x32xf32> to vector<16x32xbf16>
      %cst_76 = arith.constant dense<0.000000e+00> : vector<16x32xf32>
      %103 = tpu.matmul %101, %102, %cst_76 {dimension_numbers = #tpu.dot_dimension_numbers<[1], [0], [0], [1], [0, 0, 1, 1], [], []>} : vector<16x16xbf16>, vector<16x32xbf16>, vector<16x32xf32> -> vector<16x32xf32>
      %104 = arith.addf %arg14, %103 : vector<16x32xf32>
      scf.yield %98, %104 : vector<16x32xf32>, vector<16x32xf32>
    }
    %c0_59 = arith.constant 0 : index
    %c0_60 = arith.constant 0 : index
    %c0_61 = arith.constant 0 : index
    %49 = vector.load %arg9[%c0_59, %c0_60, %c0_61] : memref<1x16x32xf32, #tpu.memory_space<vmem>>, vector<1x16x32xf32>
    %50 = vector.shape_cast %49 : vector<1x16x32xf32> to vector<16x32xf32>
    %51 = vector.shape_cast %48#0 : vector<16x32xf32> to vector<1x16x32xf32>
    tpu.vector_store %arg9[%c0_59, %c0_60, %c0_61], %51 {strides = array<i32>} : memref<1x16x32xf32, #tpu.memory_space<vmem>>, vector<1x16x32xf32>,
    return
  }
  func.func @transform_0(%arg0: i32, %arg1: memref<2xi32, #tpu.memory_space<smem>>) -> (i32, i32) {
    %c0_i32 = arith.constant 0 : i32
    %c0_i32_0 = arith.constant 0 : i32
    %c0_i32_1 = arith.constant 0 : i32
    return %c0_i32, %c0_i32_0 : i32, i32
  }
  func.func @transform_1(%arg0: i32, %arg1: memref<2xi32, #tpu.memory_space<smem>>) -> (i32, i32, i32, i32) {
    %c0_i32 = arith.constant 0 : i32
    %c0_i32_0 = arith.constant 0 : i32
    %c0_i32_1 = arith.constant 0 : i32
    %c0_i32_2 = arith.constant 0 : i32
    return %arg0, %c0_i32, %c0_i32_0, %c0_i32_1 : i32, i32, i32, i32
  }
  func.func @transform_2(%arg0: i32, %arg1: memref<2xi32, #tpu.memory_space<smem>>) -> (i32, i32, i32, i32) {
    %c0_i32 = arith.constant 0 : i32
    %c0_i32_0 = arith.constant 0 : i32
    %c0_i32_1 = arith.constant 0 : i32
    %c0_i32_2 = arith.constant 0 : i32
    return %arg0, %c0_i32, %c0_i32_0, %c0_i32_1 : i32, i32, i32, i32
  }
  func.func @transform_3(%arg0: i32, %arg1: memref<2xi32, #tpu.memory_space<smem>>) -> (i32, i32, i32, i32) {
    %c0_i32 = arith.constant 0 : i32
    %c0_i32_0 = arith.constant 0 : i32
    %c0_i32_1 = arith.constant 0 : i32
    %c0_i32_2 = arith.constant 0 : i32
    return %arg0, %c0_i32, %c0_i32_0, %c0_i32_1 : i32, i32, i32, i32
  }
  func.func @transform_4(%arg0: i32, %arg1: memref<2xi32, #tpu.memory_space<smem>>) -> (i32, i32, i32, i32) {
    %c0_i32 = arith.constant 0 : i32
    %c0_i32_0 = arith.constant 0 : i32
    %c0_i32_1 = arith.constant 0 : i32
    %c0_i32_2 = arith.constant 0 : i32
    return %arg0, %c0_i32, %c0_i32_0, %c0_i32_1 : i32, i32, i32, i32
  }
  func.func @transform_5(%arg0: i32, %arg1: memref<2xi32, #tpu.memory_space<smem>>) -> (i32, i32, i32) {
    %c0_i32 = arith.constant 0 : i32
    %c0_i32_0 = arith.constant 0 : i32
    %c0_i32_1 = arith.constant 0 : i32
    return %arg0, %c0_i32, %c0_i32_0 : i32, i32, i32
  }
  func.func @transform_7(%arg0: i32, %arg1: memref<2xi32, #tpu.memory_space<smem>>) -> (i32, i32, i32) {
    %c0_i32 = arith.constant 0 : i32
    %c0_i32_0 = arith.constant 0 : i32
    %c0_i32_1 = arith.constant 0 : i32
    return %arg0, %c0_i32, %c0_i32_0 : i32, i32, i32
  }
}

</mosaic_0001>

<llo_original>
// kernel: tpu_custom_call.1
$region0: #{tpu_custom_call.1}
  #allocation0 [shape = 'u32[]', space=smem, size = 0x4, offset = 0x4, fixed_abs, tag = 'smem constant byte address 0x4 - core index']
  #allocation1 [shape = 'u32[144,128]{1,0:T(1,128)}', space=vmem, size = 0x12000, scoped, tag = 'internal scratch']
  #allocation2 [shape = 'bf16[2,16,16]{2,1,0:T(16,128)(2,1)}', space=vmem, size = 0x2000, scoped, tag = 'scratch operand']
  #allocation3 [shape = 's32[2]{0}', space=sflag, size = 0x8, scoped, tag = 'scratch operand']
  #allocation4 [shape = 's32[1]{0}', space=sflag, size = 0x4, scoped, tag = 'scoped memory for tpu_custom_call.1']
  #allocation5 [shape = 'u8[512]{0}', space=smem, size = 0x200, scoped, tag = 'prefetched SMEM operand 0']
  #allocation12 [shape = 's32[]', space=sflag, size = 0x4, offset = 0, fixed_abs, tag = 'sflag constant byte address 0x0 - dummy sync flag']
  #allocation13 [shape = 's32[]', space=sflag, size = 0x4, offset = 0, fixed_abs, tag = 'sflag constant byte address 0x0 - dummy sync flag']
  #allocation14 [shape = 'u32[]', space=smem, size = 0x4, offset = 0x44, fixed_abs, tag = 'smem constant byte address 0x44 - assertion arg 0']
  #allocation15 [shape = 'u32[]', space=smem, size = 0x4, offset = 0x48, fixed_abs, tag = 'smem constant byte address 0x48 - assertion arg 1']
  #allocation16 [shape = 's32[]', space=sflag, size = 0x4, offset = 0, fixed_abs, tag = 'sflag constant byte address 0x0 - dummy sync flag']
  #allocation17 [shape = 's32[]', space=sflag, size = 0x4, offset = 0, fixed_abs, tag = 'sflag constant byte address 0x0 - dummy sync flag']
  %s0 = inlined_call_operand.vmem [shape: s32[2], index: 0, kind: input, shape index: {}]
  %s1 = inlined_call_operand.vmem [shape: f32[16,32], index: 1, kind: input, shape index: {}]
  %s2 = inlined_call_operand.hbm [shape: f32[2,3,32,32], index: 2, kind: input, shape index: {}]
  %s3 = inlined_call_operand.hbm [shape: f32[2,3,32,32], index: 3, kind: input, shape index: {}]
  %s4 = inlined_call_operand.vmem [shape: f32[2,3,1,32], index: 4, kind: input, shape index: {}]
  %s5 = inlined_call_operand.vmem [shape: f32[2,3,1,32], index: 5, kind: input, shape index: {}]
  %s6 = inlined_call_operand.vmem [shape: s32[2,16,1], index: 6, kind: input, shape index: {}]
  %s7 = inlined_call_operand.hbm [shape: bf16[14,16,16], index: 7, kind: input, shape index: {}]
  %s8 = inlined_call_operand.hbm [shape: f32[2,16,32], index: 8, kind: output, shape index: {}]
  %s9 = sld [smem:[#allocation0]]
  $region84: #{tpu_custom_call.1} parent=0
    _
  %s11 = ssub.s32 1, %s9
  %s12 = scalar_select 0, %s11, %s9
  %s13 = sshll.u32 %s0, 4
  %s14 = int_to_ptr.vmem [resolvable:$true] %s13
  %16 = dma.vmem_to_smem %s14, 16, [#allocation5], [#allocation4]
  %17 = dma.done [#allocation4], 16
  %18 = sfence
  $region1: #{tpu_custom_call.1} parent=0
    #allocation6 [shape = 'u8[98304]{0}', space=vmem, size = 0x18000, scoped, tag = 'input window, operand 2']
    #allocation7 [shape = 's32[2]{0}', space=sflag, size = 0x8, scoped, tag = 'scoped memory for tpu_custom_call.1']
    #allocation8 [shape = 's32[2]{0}', space=sflag, size = 0x8, scoped, tag = 'scoped memory for tpu_custom_call.1']
    #allocation9 [shape = 'u8[98304]{0}', space=vmem, size = 0x18000, scoped, tag = 'input window, operand 3']
    #allocation10 [shape = 's32[2]{0}', space=sflag, size = 0x8, scoped, tag = 'scoped memory for tpu_custom_call.1']
    #allocation11 [shape = 'u8[16384]{0}', space=vmem, size = 0x4000, scoped, tag = 'output window, operand 0']
    %19 = vsyncpa [#allocation7], 0
    %s20 = scalar_lea.sflag [#allocation7], 1
    %21 = vsyncpa %s20, 0
    %22 = vsyncpa [#allocation10], 0
    %s23 = scalar_lea.sflag [#allocation10], 1
    %24 = vsyncpa %s23, 0
    %25 = vsyncpa [#allocation8], 0
    %s26 = scalar_lea.sflag [#allocation8], 1
    %27 = vsyncpa %s26, 0
    loop: start=0, step=1, limit=4
    $region2: #{tpu_custom_call.1} parent=1 // loop_pre_header
      _
    $region3: #{tpu_custom_call.1} parent=1 // loop_header
      %s29 = sphi 0, %s33
      %p30 = scmp.ge.s32.totalorder %s29, 4
      %s37 = sphi 0, %s37
      %s39 = sphi 0, %s37
      %s40 = sphi 0, %s39
      %s54 = sphi 0, %s40
      %s60 = sphi 0, %s62
      %s63 = sphi 0, %s60
      %s64 = sphi 0, %s63
      %s80 = sphi 0, %s64
      %s86 = sphi 0, %s88
      %s89 = sphi 0, %s86
      %s90 = sphi 0, %s89
      %s106 = sphi 0, %s90
      %s112 = sphi 0, %s114
      %s115 = sphi 0, %s112
      %s116 = sphi 0, %s115
      %s132 = sphi 0, %s116
      %s138 = sphi 0, %s140
      %s141 = sphi 0, %s138
      %s142 = sphi 0, %s141
      %s158 = sphi 0, %s142
      %s164 = sphi 0, %s166
      %s167 = sphi 0, %s164
      %s168 = sphi 0, %s167
      %s184 = sphi 0, %s168
      %s190 = sphi 0, %s192
      %s193 = sphi 0, %s190
      %s194 = sphi 0, %s193
      %s210 = sphi 0, %s194
    $region4: #{tpu_custom_call.1} parent=1 // loop_header_branch
      %32 = sbr.rel (%p30) target = $region8
    $region5: #{tpu_custom_call.1} parent=1 // loop_body
      %s34 = ssub.s32 %s29, 1
      %s35 = ssub.s32 %s29, 2
      %s36 = sadd.s32 %s29, 1
      %s38 = sadd.s32 %s37, 1
      %p41 = scmp.eq.s32.totalorder %s29, 1
      %p42 = scmp.ne.s32.totalorder %s37, %s39
      %p43 = scmp.eq.s32.totalorder %s29, 0
      %p44 = por %p42, %p43
      %p45 = scmp.ne.s32.totalorder %s37, %s39
      %p46 = scmp.eq.s32.totalorder %s34, 1
      %p47 = por %p45, %p46
      %p48 = scmp.ne.s32.totalorder %s39, %s40
      %p49 = scmp.eq.s32.totalorder %s34, 0
      %p50 = por %p48, %p49
      %p51 = scmp.ne.s32.totalorder %s39, %s40
      %p52 = scmp.eq.s32.totalorder %s35, 1
      %p53 = por %p51, %p52
      %p55 = scmp.ne.s32.totalorder %s40, %s54
      %p56 = scmp.eq.s32.totalorder %s35, 0
      %p57 = por %p55, %p56
      %s58 = ssub.s32 %s29, %s36
      %p59 = scmp.eq.s32.totalorder %s58, 0
      %s61 = sadd.s32 %s60, 1
      %s62 = scalar_select %p59, %s60, %s61
      %p65 = pneg %p59
      %p66 = scmp.eq.s32.totalorder %s29, 1
      %p67 = por %p65, %p66
      %p68 = scmp.ne.s32.totalorder %s60, %s63
      %p69 = scmp.eq.s32.totalorder %s29, 0
      %p70 = por %p68, %p69
      %p71 = scmp.ne.s32.totalorder %s60, %s63
      %p72 = scmp.eq.s32.totalorder %s34, 1
      %p73 = por %p71, %p72
      %p74 = scmp.ne.s32.totalorder %s63, %s64
      %p75 = scmp.eq.s32.totalorder %s34, 0
      %p76 = por %p74, %p75
      %p77 = scmp.ne.s32.totalorder %s63, %s64
      %p78 = scmp.eq.s32.totalorder %s35, 1
      %p79 = por %p77, %p78
      %p81 = scmp.ne.s32.totalorder %s64, %s80
      %p82 = scmp.eq.s32.totalorder %s35, 0
      %p83 = por %p81, %p82
      %s84 = ssub.s32 %s29, %s36
      %p85 = scmp.eq.s32.totalorder %s84, 0
      %s87 = sadd.s32 %s86, 1
      %s88 = scalar_select %p85, %s86, %s87
      %p91 = pneg %p85
      %p92 = scmp.eq.s32.totalorder %s29, 1
      %p93 = por %p91, %p92
      %p94 = scmp.ne.s32.totalorder %s86, %s89
      %p95 = scmp.eq.s32.totalorder %s29, 0
      %p96 = por %p94, %p95
      %p97 = scmp.ne.s32.totalorder %s86, %s89
      %p98 = scmp.eq.s32.totalorder %s34, 1
      %p99 = por %p97, %p98
      %p100 = scmp.ne.s32.totalorder %s89, %s90
      %p101 = scmp.eq.s32.totalorder %s34, 0
      %p102 = por %p100, %p101
      %p103 = scmp.ne.s32.totalorder %s89, %s90
      %p104 = scmp.eq.s32.totalorder %s35, 1
      %p105 = por %p103, %p104
      %p107 = scmp.ne.s32.totalorder %s90, %s106
      %p108 = scmp.eq.s32.totalorder %s35, 0
      %p109 = por %p107, %p108
      %s110 = ssub.s32 %s29, %s36
      %p111 = scmp.eq.s32.totalorder %s110, 0
      %s113 = sadd.s32 %s112, 1
      %s114 = scalar_select %p111, %s112, %s113
      %p117 = pneg %p111
      %p118 = scmp.eq.s32.totalorder %s29, 1
      %p119 = por %p117, %p118
      %p120 = scmp.ne.s32.totalorder %s112, %s115
      %p121 = scmp.eq.s32.totalorder %s29, 0
      %p122 = por %p120, %p121
      %p123 = scmp.ne.s32.totalorder %s112, %s115
      %p124 = scmp.eq.s32.totalorder %s34, 1
      %p125 = por %p123, %p124
      %p126 = scmp.ne.s32.totalorder %s115, %s116
      %p127 = scmp.eq.s32.totalorder %s34, 0
      %p128 = por %p126, %p127
      %p129 = scmp.ne.s32.totalorder %s115, %s116
      %p130 = scmp.eq.s32.totalorder %s35, 1
      %p131 = por %p129, %p130
      %p133 = scmp.ne.s32.totalorder %s116, %s132
      %p134 = scmp.eq.s32.totalorder %s35, 0
      %p135 = por %p133, %p134
      %s136 = ssub.s32 %s29, %s36
      %p137 = scmp.eq.s32.totalorder %s136, 0
      %s139 = sadd.s32 %s138, 1
      %s140 = scalar_select %p137, %s138, %s139
      %p143 = pneg %p137
      %p144 = scmp.eq.s32.totalorder %s29, 1
      %p145 = por %p143, %p144
      %p146 = scmp.ne.s32.totalorder %s138, %s141
      %p147 = scmp.eq.s32.totalorder %s29, 0
      %p148 = por %p146, %p147
      %p149 = scmp.ne.s32.totalorder %s138, %s141
      %p150 = scmp.eq.s32.totalorder %s34, 1
      %p151 = por %p149, %p150
      %p152 = scmp.ne.s32.totalorder %s141, %s142
      %p153 = scmp.eq.s32.totalorder %s34, 0
      %p154 = por %p152, %p153
      %p155 = scmp.ne.s32.totalorder %s141, %s142
      %p156 = scmp.eq.s32.totalorder %s35, 1
      %p157 = por %p155, %p156
      %p159 = scmp.ne.s32.totalorder %s142, %s158
      %p160 = scmp.eq.s32.totalorder %s35, 0
      %p161 = por %p159, %p160
      %s162 = ssub.s32 %s29, %s36
      %p163 = scmp.eq.s32.totalorder %s162, 0
      %s165 = sadd.s32 %s164, 1
      %s166 = scalar_select %p163, %s164, %s165
      %p169 = pneg %p163
      %p170 = scmp.eq.s32.totalorder %s29, 1
      %p171 = por %p169, %p170
      %p172 = scmp.ne.s32.totalorder %s164, %s167
      %p173 = scmp.eq.s32.totalorder %s29, 0
      %p174 = por %p172, %p173
      %p175 = scmp.ne.s32.totalorder %s164, %s167
      %p176 = scmp.eq.s32.totalorder %s34, 1
      %p177 = por %p175, %p176
      %p178 = scmp.ne.s32.totalorder %s167, %s168
      %p179 = scmp.eq.s32.totalorder %s34, 0
      %p180 = por %p178, %p179
      %p181 = scmp.ne.s32.totalorder %s167, %s168
      %p182 = scmp.eq.s32.totalorder %s35, 1
      %p183 = por %p181, %p182
      %p185 = scmp.ne.s32.totalorder %s168, %s184
      %p186 = scmp.eq.s32.totalorder %s35, 0
      %p187 = por %p185, %p186
      %s188 = ssub.s32 %s29, %s36
      %p189 = scmp.eq.s32.totalorder %s188, 0
      %s191 = sadd.s32 %s190, 1
      %s192 = scalar_select %p189, %s190, %s191
      %p195 = pneg %p189
      %p196 = scmp.eq.s32.totalorder %s29, 1
      %p197 = por %p195, %p196
      %p198 = scmp.ne.s32.totalorder %s190, %s193
      %p199 = scmp.eq.s32.totalorder %s29, 0
      %p200 = por %p198, %p199
      %p201 = scmp.ne.s32.totalorder %s190, %s193
      %p202 = scmp.eq.s32.totalorder %s34, 1
      %p203 = por %p201, %p202
      %p204 = scmp.ne.s32.totalorder %s193, %s194
      %p205 = scmp.eq.s32.totalorder %s34, 0
      %p206 = por %p204, %p205
      %p207 = scmp.ne.s32.totalorder %s193, %s194
      %p208 = scmp.eq.s32.totalorder %s35, 1
      %p209 = por %p207, %p208
      %p211 = scmp.ne.s32.totalorder %s194, %s210
      %p212 = scmp.eq.s32.totalorder %s35, 0
      %p213 = por %p211, %p212
      %p214 = scmp.le.s32.totalorder 1, %s29
      %p215 = scmp.lt.s32.totalorder %s29, 3
      %p216 = pnand %p214, %p215
      %p217 = pneg %p216
      // Predicated region
      $region9: #{tpu_custom_call.1} parent=5 // pred_check
        _
      $region10: #{tpu_custom_call.1} parent=5 // pred_check_branch
        %219 = sbr.rel (%p216) target = $region12
      $region11: #{tpu_custom_call.1} parent=5 // pred_region
        %s220 = ssub.s32 %s29, 1
        // Predicated region
        $region13: #{tpu_custom_call.1} parent=11 // pred_check
          %p221 = pneg %p50
        $region14: #{tpu_custom_call.1} parent=11 // pred_check_branch
          %223 = sbr.rel (%p221) target = $region16
        $region15: #{tpu_custom_call.1} parent=11 // pred_region
          _
        $region16: #{tpu_custom_call.1} parent=11 // pred_fallthru
          _
      $region12: #{tpu_custom_call.1} parent=5 // pred_fallthru
        _
      %p224 = scmp.lt.s32.totalorder %s29, 2
      // Predicated region
      $region17: #{tpu_custom_call.1} parent=5 // pred_check
        %p225 = pneg %p224
      $region18: #{tpu_custom_call.1} parent=5 // pred_check_branch
        %227 = sbr.rel (%p225) target = $region20
      $region19: #{tpu_custom_call.1} parent=5 // pred_region
        // Predicated region
        $region21: #{tpu_custom_call.1} parent=19 // pred_check
          %p228 = pneg %p70
        $region22: #{tpu_custom_call.1} parent=19 // pred_check_branch
          %230 = sbr.rel (%p228) target = $region24
        $region23: #{tpu_custom_call.1} parent=19 // pred_region
          %s231 = sand.u32 %s60, 1
          %s232 = scalar_lea.sflag [#allocation7], %s231
          %s233 = sand.u32 %s60, 1
          %s234 = smul.addr %s233, 96
          %s235 = scalar_lea.vmem [#allocation6], %s234
          %s237 = ssub.s32 1536, 1536
          %238 = vsyncadd %s232, %s237
          %s239 = smul.addr %s29, 12
          %s240 = smul.addr %s239, 128
          %s241 = scalar_lea.hbm %s2, %s240
          %s242 = sshll.u32 %s235, 4
          %s243 = int_to_ptr.vmem [resolvable:$true] %s242
          %248 = dma.hbm_to_vmem [thread:$0]  %s241, 1536, %s243, %s232, 128, 128, 8
        $region24: #{tpu_custom_call.1} parent=19 // pred_fallthru
          _
        // Predicated region
        $region25: #{tpu_custom_call.1} parent=19 // pred_check
          %p249 = pneg %p96
        $region26: #{tpu_custom_call.1} parent=19 // pred_check_branch
          %251 = sbr.rel (%p249) target = $region28
        $region27: #{tpu_custom_call.1} parent=19 // pred_region
          %s252 = sand.u32 %s86, 1
          %s253 = scalar_lea.sflag [#allocation10], %s252
          %s254 = sand.u32 %s86, 1
          %s255 = smul.addr %s254, 96
          %s256 = scalar_lea.vmem [#allocation9], %s255
          %s258 = ssub.s32 1536, 1536
          %259 = vsyncadd %s253, %s258
          %s260 = smul.addr %s29, 12
          %s261 = smul.addr %s260, 128
          %s262 = scalar_lea.hbm %s3, %s261
          %s263 = sshll.u32 %s256, 4
          %s264 = int_to_ptr.vmem [resolvable:$true] %s263
          %269 = dma.hbm_to_vmem [thread:$0]  %s262, 1536, %s264, %s253, 128, 128, 8
        $region28: #{tpu_custom_call.1} parent=19 // pred_fallthru
          _
        // Predicated region
        $region29: #{tpu_custom_call.1} parent=19 // pred_check
          %p270 = pneg %p122
        $region30: #{tpu_custom_call.1} parent=19 // pred_check_branch
          %272 = sbr.rel (%p270) target = $region32
        $region31: #{tpu_custom_call.1} parent=19 // pred_region
          %p273 = scmp.lt.s32.totalorder %s29, 1
          %s274 = scalar_select %p273, %s29, 1
          %s275 = smul.addr %s274, 3
          %s276 = scalar_lea.vmem %s4, %s275
        $region32: #{tpu_custom_call.1} parent=19 // pred_fallthru
          _
        // Predicated region
        $region33: #{tpu_custom_call.1} parent=19 // pred_check
          %p277 = pneg %p148
        $region34: #{tpu_custom_call.1} parent=19 // pred_check_branch
          %279 = sbr.rel (%p277) target = $region36
        $region35: #{tpu_custom_call.1} parent=19 // pred_region
          %p280 = scmp.lt.s32.totalorder %s29, 1
          %s281 = scalar_select %p280, %s29, 1
          %s282 = smul.addr %s281, 3
          %s283 = scalar_lea.vmem %s5, %s282
        $region36: #{tpu_custom_call.1} parent=19 // pred_fallthru
          _
        // Predicated region
        $region37: #{tpu_custom_call.1} parent=19 // pred_check
          %p284 = pneg %p174
        $region38: #{tpu_custom_call.1} parent=19 // pred_check_branch
          %286 = sbr.rel (%p284) target = $region40
        $region39: #{tpu_custom_call.1} parent=19 // pred_region
          %p287 = scmp.lt.s32.totalorder %s29, 1
          %s288 = scalar_select %p287, %s29, 1
          %s289 = smul.addr %s288, 2
          %s290 = smul.addr %s289, 8
          %s291 = scalar_lea.vmem %s6, %s290
        $region40: #{tpu_custom_call.1} parent=19 // pred_fallthru
          _
      $region20: #{tpu_custom_call.1} parent=5 // pred_fallthru
        _
      %p292 = scmp.le.s32.totalorder 1, %s29
      %p293 = scmp.lt.s32.totalorder %s29, 3
      %p294 = pnand %p292, %p293
      %p295 = pneg %p294
      // Predicated region
      $region41: #{tpu_custom_call.1} parent=5 // pred_check
        _
      $region42: #{tpu_custom_call.1} parent=5 // pred_check_branch
        %297 = sbr.rel (%p294) target = $region44
      $region43: #{tpu_custom_call.1} parent=5 // pred_region
        %s298 = ssub.s32 %s29, 1
        %s299 = sand.u32 %s63, 1
        %s300 = scalar_lea.sflag [#allocation7], %s299
        %s301 = sand.u32 %s63, 1
        %s302 = smul.addr %s301, 96
        %s303 = scalar_lea.vmem [#allocation6], %s302
        // Predicated region
        $region45: #{tpu_custom_call.1} parent=43 // pred_check
          %p304 = pneg %p76
        $region46: #{tpu_custom_call.1} parent=43 // pred_check_branch
          %306 = sbr.rel (%p304) target = $region48
        $region47: #{tpu_custom_call.1} parent=43 // pred_region
          %307 = dma.done %s300, 1536
        $region48: #{tpu_custom_call.1} parent=43 // pred_fallthru
          _
        %s308 = sand.u32 %s89, 1
        %s309 = scalar_lea.sflag [#allocation10], %s308
        %s310 = sand.u32 %s89, 1
        %s311 = smul.addr %s310, 96
        %s312 = scalar_lea.vmem [#allocation9], %s311
        // Predicated region
        $region49: #{tpu_custom_call.1} parent=43 // pred_check
          %p313 = pneg %p102
        $region50: #{tpu_custom_call.1} parent=43 // pred_check_branch
          %315 = sbr.rel (%p313) target = $region52
        $region51: #{tpu_custom_call.1} parent=43 // pred_region
          %316 = dma.done %s309, 1536
        $region52: #{tpu_custom_call.1} parent=43 // pred_fallthru
          _
        %p317 = pneg %p50
        %p318 = pneg %p47
        %s319 = sand.u32 %s63, 1
        %s320 = scalar_lea.sflag [#allocation7], %s319
        %s321 = sand.u32 %s63, 1
        %s322 = smul.addr %s321, 96
        %s323 = scalar_lea.vmem [#allocation6], %s322
        %p324 = pneg %p76
        %p325 = pneg %p73
        %s326 = sand.u32 %s89, 1
        %s327 = scalar_lea.sflag [#allocation10], %s326
        %s328 = sand.u32 %s89, 1
        %s329 = smul.addr %s328, 96
        %s330 = scalar_lea.vmem [#allocation9], %s329
        %p331 = pneg %p102
        %p332 = pneg %p99
        %p333 = scmp.lt.s32.totalorder %s34, 1
        %s334 = scalar_select %p333, %s34, 1
        %s335 = smul.addr %s334, 3
        %s336 = scalar_lea.vmem %s4, %s335
        %p337 = pneg %p128
        %p338 = pneg %p125
        %p339 = scmp.lt.s32.totalorder %s34, 1
        %s340 = scalar_select %p339, %s34, 1
        %s341 = smul.addr %s340, 3
        %s342 = scalar_lea.vmem %s5, %s341
        %p343 = pneg %p154
        %p344 = pneg %p151
        %p345 = scmp.lt.s32.totalorder %s34, 1
        %s346 = scalar_select %p345, %s34, 1
        %s347 = smul.addr %s346, 2
        %s348 = smul.addr %s347, 8
        %s349 = scalar_lea.vmem %s6, %s348
        %p350 = pneg %p180
        %p351 = pneg %p177
        %p352 = pneg %p206
        %p353 = pneg %p203
        %s354 = sand.u32 %s193, 1
        %s355 = scalar_lea.sflag [#allocation8], %s354
        %s356 = sand.u32 %s193, 1
        %s357 = smul.addr %s356, 16
        %s358 = scalar_lea.vmem [#allocation11], %s357
        %p359 = scmp.lt.s32.totalorder %s34, 1
        %s360 = scalar_select %p359, %s34, 1
        %s361 = smul.addr %s360, 3
        %s362 = scalar_lea.vmem %s4, %s361
        %p363 = scmp.lt.s32.totalorder %s34, 1
        %s364 = scalar_select %p363, %s34, 1
        %s365 = smul.addr %s364, 3
        %s366 = scalar_lea.vmem %s5, %s365
        %p367 = scmp.lt.s32.totalorder %s34, 1
        %s368 = scalar_select %p367, %s34, 1
        %s369 = smul.addr %s368, 2
        %s370 = smul.addr %s369, 8
        %s371 = scalar_lea.vmem %s6, %s370
        %s373 = sld [smem:[#allocation5 + %s34]]
        %s374 = smul.u32 %s34, 7
        %s375 = smul.u32 %s374, 2
        %s376 = smul.addr %s375, 64
        %s377 = scalar_lea.hbm %s7, %s376
        // Predicated region
        $region53: #{tpu_custom_call.1} parent=43 // pred_check
          _
        $region54: #{tpu_custom_call.1} parent=43 // pred_check_branch
          %379 = sbr.rel target = $region56
        $region55: #{tpu_custom_call.1} parent=43 // pred_region
          %380 = sst [smem:[#allocation14]] [#allocation13]
          %381 = sst [smem:[#allocation15]] [#allocation12]
        $region56: #{tpu_custom_call.1} parent=43 // pred_fallthru
          _
        %383 = shalt.err (0)
        %s385 = sshll.u32 [#allocation2], 4
        %s386 = int_to_ptr.vmem [resolvable:$true] %s385
        %388 = dma.hbm_to_vmem [thread:$0]  %s377, 128, %s386, [#allocation3]
        %v389 = vld [vmem:[%s1] sm:$0xff]
        %v390 = vld [vmem:[%s1 + $0x8] sm:$0xff]
        %v391 = vld [vmem:[%s303] sm:$0xff]
        %v392 = vld [vmem:[%s303 + $0x8] sm:$0xff]
        %v393 = vld [vmem:[%s303 + $0x10] sm:$0xff]
        %v394 = vld [vmem:[%s303 + $0x18] sm:$0xff]
        %v395 = vld [vmem:[%s362] sm:$0x1]
        %v397 = vlaneseq
        %v398 = vshrl.u32 %v397, 7
        %v399 = vsub.s32 0, %v398
        %v400 = vrot.slane %v395, %v399
        %vm402 = vcmask 261120
        %v404 = vsel %vm402, %v389, 0
        %v407 = vsel %vm402, %v390, 0
        %409 = vmatprep.subr.mxu0 0.0
        %410 = vmatpush1.msra.mxu0 %v391
        %411 = vmatprep.subr.mxu0 0.0
        %412 = vmatpush1.msra.mxu0 %v392
        %413 = vmatprep.subr.mxu0 0.0
        %414 = vmatpush1.msra.mxu0 %v393
        %415 = vmatprep.subr.mxu0 0.0
        %416 = vmatpush1.msra.mxu0 %v394
        %417 = vmatprep.subr.mxu0 0.0
        %418 = vmatpush1.msra.mxu0 0.0
        %419 = vmatprep.subr.mxu0 0.0
        %420 = vmatpush1.msra.mxu0 0.0
        %421 = vmatprep.subr.mxu0 0.0
        %422 = vmatpush1.msra.mxu0 0.0
        %423 = vmatprep.subr.mxu0 0.0
        %424 = vmatpush1.msra.mxu0 0.0
        %425 = vmatprep.subr.mxu0 0.0
        %426 = vmatpush1.msra.mxu0 0.0
        %427 = vmatprep.subr.mxu0 0.0
        %428 = vmatpush1.msra.mxu0 0.0
        %429 = vmatprep.subr.mxu0 0.0
        %430 = vmatpush1.msra.mxu0 0.0
        %431 = vmatprep.subr.mxu0 0.0
        %432 = vmatpush1.msra.mxu0 0.0
        %433 = vmatprep.subr.mxu0 0.0
        %434 = vmatpush1.msra.mxu0 0.0
        %435 = vmatprep.subr.mxu0 0.0
        %436 = vmatpush1.msra.mxu0 0.0
        %437 = vmatprep.subr.mxu0 0.0
        %438 = vmatpush1.msra.mxu0 0.0
        %439 = vmatprep.subr.mxu0 0.0
        %440 = vmatpush1.msra.mxu0 0.0
        %441 = vmatprep.subr.mxu0 0.0
        %442 = vmatpush1.msra.mxu0 0.0
        %443 = vmatprep.subr.mxu0 0.0
        %444 = vmatpush1.msra.mxu0 0.0
        %445 = vmatprep.subr.mxu0 0.0
        %446 = vmatpush1.msra.mxu0 0.0
        %447 = vmatprep.subr.mxu0 0.0
        %448 = vmatpush1.msra.mxu0 0.0
        %449 = vmatprep.subr.mxu0 0.0
        %450 = vmatpush1.msra.mxu0 0.0
        %451 = vmatprep.subr.mxu0 0.0
        %452 = vmatpush1.msra.mxu0 0.0
        %453 = vmatprep.subr.mxu0 0.0
        %454 = vmatpush1.msra.mxu0 0.0
        %455 = vmatprep.subr.mxu0 0.0
        %456 = vmatpush1.msra.mxu0 0.0
        %457 = vmatprep.subr.mxu0 0.0
        %458 = vmatpush1.msra.mxu0 0.0
        %459 = vmatprep.subr.mxu0 0.0
        %460 = vmatpush1.msra.mxu0 0.0
        %461 = vmatprep.subr.mxu0 0.0
        %462 = vmatpush1.msra.mxu0 0.0
        %463 = vmatprep.subr.mxu0 0.0
        %464 = vmatpush1.msra.mxu0 0.0
        %465 = vmatprep.subr.mxu0 0.0
        %466 = vmatpush1.msra.mxu0 0.0
        %467 = vmatprep.subr.mxu0 0.0
        %468 = vmatpush1.msra.mxu0 0.0
        %469 = vmatprep.subr.mxu0 0.0
        %470 = vmatpush1.msra.mxu0 0.0
        %471 = vmatprep.subr.mxu0 0.0
        %472 = vmatpush1.msra.mxu0 0.0
        %473 = vmatprep.mubr.f32.mxu0 0.0
        %474 = vmatmul.mubr.f32.gmra.mrb[0].mxu0 %v404
        %v475 = vpop.f32.mrb[0].mxu0
        %v476 = vadd.f32 %v400, %v475
        %v477 = vpop.f32.mrb[0].mxu0
        %478 = vmatprep.mubr.f32.mxu0 0.0
        %479 = vmatmul.mubr.f32.gmra.mrb[0].mxu0 %v407
        %v480 = vpop.f32.mrb[0].mxu0
        %v481 = vadd.f32 %v400, %v480
        %v482 = vpop.f32.mrb[0].mxu0
        %483 = vdwg.mxu0
        %s484 = scalar_lea.vmem %s303, 32 [#allocation6]
        %v485 = vld [vmem:[%s484] sm:$0xff]
        %v486 = vld [vmem:[%s484 + $0x8] sm:$0xff]
        %v487 = vld [vmem:[%s484 + $0x10] sm:$0xff]
        %v488 = vld [vmem:[%s484 + $0x18] sm:$0xff]
        %s489 = scalar_lea.vmem %s362, 1
        %v490 = vld [vmem:[%s489] sm:$0x1]
        %v492 = vlaneseq
        %v493 = vshrl.u32 %v492, 7
        %v494 = vsub.s32 0, %v493
        %v495 = vrot.slane %v490, %v494
        %497 = vmatprep.subr.mxu0 0.0
        %498 = vmatpush1.msra.mxu0 %v485
        %499 = vmatprep.subr.mxu0 0.0
        %500 = vmatpush1.msra.mxu0 %v486
        %501 = vmatprep.subr.mxu0 0.0
        %502 = vmatpush1.msra.mxu0 %v487
        %503 = vmatprep.subr.mxu0 0.0
        %504 = vmatpush1.msra.mxu0 %v488
        %505 = vmatprep.subr.mxu0 0.0
        %506 = vmatpush1.msra.mxu0 0.0
        %507 = vmatprep.subr.mxu0 0.0
        %508 = vmatpush1.msra.mxu0 0.0
        %509 = vmatprep.subr.mxu0 0.0
        %510 = vmatpush1.msra.mxu0 0.0
        %511 = vmatprep.subr.mxu0 0.0
        %512 = vmatpush1.msra.mxu0 0.0
        %513 = vmatprep.subr.mxu0 0.0
        %514 = vmatpush1.msra.mxu0 0.0
        %515 = vmatprep.subr.mxu0 0.0
        %516 = vmatpush1.msra.mxu0 0.0
        %517 = vmatprep.subr.mxu0 0.0
        %518 = vmatpush1.msra.mxu0 0.0
        %519 = vmatprep.subr.mxu0 0.0
        %520 = vmatpush1.msra.mxu0 0.0
        %521 = vmatprep.subr.mxu0 0.0
        %522 = vmatpush1.msra.mxu0 0.0
        %523 = vmatprep.subr.mxu0 0.0
        %524 = vmatpush1.msra.mxu0 0.0
        %525 = vmatprep.subr.mxu0 0.0
        %526 = vmatpush1.msra.mxu0 0.0
        %527 = vmatprep.subr.mxu0 0.0
        %528 = vmatpush1.msra.mxu0 0.0
        %529 = vmatprep.subr.mxu0 0.0
        %530 = vmatpush1.msra.mxu0 0.0
        %531 = vmatprep.subr.mxu0 0.0
        %532 = vmatpush1.msra.mxu0 0.0
        %533 = vmatprep.subr.mxu0 0.0
        %534 = vmatpush1.msra.mxu0 0.0
        %535 = vmatprep.subr.mxu0 0.0
        %536 = vmatpush1.msra.mxu0 0.0
        %537 = vmatprep.subr.mxu0 0.0
        %538 = vmatpush1.msra.mxu0 0.0
        %539 = vmatprep.subr.mxu0 0.0
        %540 = vmatpush1.msra.mxu0 0.0
        %541 = vmatprep.subr.mxu0 0.0
        %542 = vmatpush1.msra.mxu0 0.0
        %543 = vmatprep.subr.mxu0 0.0
        %544 = vmatpush1.msra.mxu0 0.0
        %545 = vmatprep.subr.mxu0 0.0
        %546 = vmatpush1.msra.mxu0 0.0
        %547 = vmatprep.subr.mxu0 0.0
        %548 = vmatpush1.msra.mxu0 0.0
        %549 = vmatprep.subr.mxu0 0.0
        %550 = vmatpush1.msra.mxu0 0.0
        %551 = vmatprep.subr.mxu0 0.0
        %552 = vmatpush1.msra.mxu0 0.0
        %553 = vmatprep.subr.mxu0 0.0
        %554 = vmatpush1.msra.mxu0 0.0
        %555 = vmatprep.subr.mxu0 0.0
        %556 = vmatpush1.msra.mxu0 0.0
        %557 = vmatprep.subr.mxu0 0.0
        %558 = vmatpush1.msra.mxu0 0.0
        %559 = vmatprep.subr.mxu0 0.0
        %560 = vmatpush1.msra.mxu0 0.0
        %561 = vmatprep.mubr.f32.mxu0 0.0
        %562 = vmatmul.mubr.f32.gmra.mrb[0].mxu0 %v404
        %v563 = vpop.f32.mrb[0].mxu0
        %v564 = vadd.f32 %v495, %v563
        %v565 = vpop.f32.mrb[0].mxu0
        %566 = vmatprep.mubr.f32.mxu0 0.0
        %567 = vmatmul.mubr.f32.gmra.mrb[0].mxu0 %v407
        %v568 = vpop.f32.mrb[0].mxu0
        %v569 = vadd.f32 %v495, %v568
        %v570 = vpop.f32.mrb[0].mxu0
        %571 = vdwg.mxu0
        %s572 = scalar_lea.vmem %s303, 64 [#allocation6]
        %v573 = vld [vmem:[%s572] sm:$0xff]
        %v574 = vld [vmem:[%s572 + $0x8] sm:$0xff]
        %v575 = vld [vmem:[%s572 + $0x10] sm:$0xff]
        %v576 = vld [vmem:[%s572 + $0x18] sm:$0xff]
        %s577 = scalar_lea.vmem %s362, 2
        %v578 = vld [vmem:[%s577] sm:$0x1]
        %v580 = vlaneseq
        %v581 = vshrl.u32 %v580, 7
        %v582 = vsub.s32 0, %v581
        %v583 = vrot.slane %v578, %v582
        %585 = vmatprep.subr.mxu0 0.0
        %586 = vmatpush1.msra.mxu0 %v573
        %587 = vmatprep.subr.mxu0 0.0
        %588 = vmatpush1.msra.mxu0 %v574
        %589 = vmatprep.subr.mxu0 0.0
        %590 = vmatpush1.msra.mxu0 %v575
        %591 = vmatprep.subr.mxu0 0.0
        %592 = vmatpush1.msra.mxu0 %v576
        %593 = vmatprep.subr.mxu0 0.0
        %594 = vmatpush1.msra.mxu0 0.0
        %595 = vmatprep.subr.mxu0 0.0
        %596 = vmatpush1.msra.mxu0 0.0
        %597 = vmatprep.subr.mxu0 0.0
        %598 = vmatpush1.msra.mxu0 0.0
        %599 = vmatprep.subr.mxu0 0.0
        %600 = vmatpush1.msra.mxu0 0.0
        %601 = vmatprep.subr.mxu0 0.0
        %602 = vmatpush1.msra.mxu0 0.0
        %603 = vmatprep.subr.mxu0 0.0
        %604 = vmatpush1.msra.mxu0 0.0
        %605 = vmatprep.subr.mxu0 0.0
        %606 = vmatpush1.msra.mxu0 0.0
        %607 = vmatprep.subr.mxu0 0.0
        %608 = vmatpush1.msra.mxu0 0.0
        %609 = vmatprep.subr.mxu0 0.0
        %610 = vmatpush1.msra.mxu0 0.0
        %611 = vmatprep.subr.mxu0 0.0
        %612 = vmatpush1.msra.mxu0 0.0
        %613 = vmatprep.subr.mxu0 0.0
        %614 = vmatpush1.msra.mxu0 0.0
        %615 = vmatprep.subr.mxu0 0.0
        %616 = vmatpush1.msra.mxu0 0.0
        %617 = vmatprep.subr.mxu0 0.0
        %618 = vmatpush1.msra.mxu0 0.0
        %619 = vmatprep.subr.mxu0 0.0
        %620 = vmatpush1.msra.mxu0 0.0
        %621 = vmatprep.subr.mxu0 0.0
        %622 = vmatpush1.msra.mxu0 0.0
        %623 = vmatprep.subr.mxu0 0.0
        %624 = vmatpush1.msra.mxu0 0.0
        %625 = vmatprep.subr.mxu0 0.0
        %626 = vmatpush1.msra.mxu0 0.0
        %627 = vmatprep.subr.mxu0 0.0
        %628 = vmatpush1.msra.mxu0 0.0
        %629 = vmatprep.subr.mxu0 0.0
        %630 = vmatpush1.msra.mxu0 0.0
        %631 = vmatprep.subr.mxu0 0.0
        %632 = vmatpush1.msra.mxu0 0.0
        %633 = vmatprep.subr.mxu0 0.0
        %634 = vmatpush1.msra.mxu0 0.0
        %635 = vmatprep.subr.mxu0 0.0
        %636 = vmatpush1.msra.mxu0 0.0
        %637 = vmatprep.subr.mxu0 0.0
        %638 = vmatpush1.msra.mxu0 0.0
        %639 = vmatprep.subr.mxu0 0.0
        %640 = vmatpush1.msra.mxu0 0.0
        %641 = vmatprep.subr.mxu0 0.0
        %642 = vmatpush1.msra.mxu0 0.0
        %643 = vmatprep.subr.mxu0 0.0
        %644 = vmatpush1.msra.mxu0 0.0
        %645 = vmatprep.subr.mxu0 0.0
        %646 = vmatpush1.msra.mxu0 0.0
        %647 = vmatprep.subr.mxu0 0.0
        %648 = vmatpush1.msra.mxu0 0.0
        %649 = vmatprep.mubr.f32.mxu0 0.0
        %650 = vmatmul.mubr.f32.gmra.mrb[0].mxu0 %v404
        %v651 = vpop.f32.mrb[0].mxu0
        %v652 = vadd.f32 %v583, %v651
        %v653 = vpop.f32.mrb[0].mxu0
        %654 = vmatprep.mubr.f32.mxu0 0.0
        %655 = vmatmul.mubr.f32.gmra.mrb[0].mxu0 %v407
        %v656 = vpop.f32.mrb[0].mxu0
        %v657 = vadd.f32 %v583, %v656
        %v658 = vpop.f32.mrb[0].mxu0
        %659 = vdwg.mxu0
        %v660 = vld [vmem:[%s312] sm:$0xff]
        %v661 = vld [vmem:[%s312 + $0x8] sm:$0xff]
        %v662 = vld [vmem:[%s312 + $0x10] sm:$0xff]
        %v663 = vld [vmem:[%s312 + $0x18] sm:$0xff]
        %s664 = scalar_lea.vmem %s312, 32 [#allocation9]
        %v665 = vld [vmem:[%s664] sm:$0xff]
        %v666 = vld [vmem:[%s664 + $0x8] sm:$0xff]
        %v667 = vld [vmem:[%s664 + $0x10] sm:$0xff]
        %v668 = vld [vmem:[%s664 + $0x18] sm:$0xff]
        %s669 = scalar_lea.vmem %s312, 64 [#allocation9]
        %v670 = vld [vmem:[%s669] sm:$0xff]
        %v671 = vld [vmem:[%s669 + $0x8] sm:$0xff]
        %v672 = vld [vmem:[%s669 + $0x10] sm:$0xff]
        %v673 = vld [vmem:[%s669 + $0x18] sm:$0xff]
        %v674 = vld [vmem:[%s366] sm:$0x1]
        %s675 = scalar_lea.vmem %s366, 1
        %v676 = vld [vmem:[%s675] sm:$0x1]
        %s677 = scalar_lea.vmem %s366, 2
        %v678 = vld [vmem:[%s677] sm:$0x1]
        %v679 = vld [vmem:[%s371] sm:$0xff]
        %v680 = vld [vmem:[%s371 + $0x8] sm:$0xff]
        // While loop
        $region57: #{tpu_custom_call.1} parent=43 // loop_pre_header
          _
        $region58: #{tpu_custom_call.1} parent=43 // loop_header
          %s682 = sphi 0, %s684
          %p683 = scmp.ge.s32.totalorder %s682, %s373
          %v687 = vphi 0.0, %v1037
          %v688 = vphi 0.0, %v1038
          %v689 = vphi 0.0, %v1088
          %v690 = vphi 0.0, %v1089
        $region59: #{tpu_custom_call.1} parent=43 // loop_header_branch
          %686 = sbr.rel (%p683) target = $region63
        $region60: #{tpu_custom_call.1} parent=43 // loop_body
          %p691 = scmp.lt.s32.totalorder %s682, 0
          %s692 = ssub.s32 0, %s682
          %s693 = scalar_select %p691, %s692, %s682
          %s694 = sand.u32 %s693, 1
          %s695 = ssub.s32 0, %s694
          %s696 = scalar_select %p691, %s695, %s694
          %s697 = scalar_lea.sflag [#allocation3], %s696
          %s698 = smul.u32 4, 2
          %s699 = smul.u32 %s698, 1
          %s700 = sshll.u32 %s699, 4
          %701 = dma.done %s697, %s700
          %s702 = sadd.s32 %s682, 1
          %p703 = scmp.lt.s32.totalorder %s702, %s373
          // Predicated region
          $region64: #{tpu_custom_call.1} parent=60 // pred_check
            %p704 = pneg %p703
          $region65: #{tpu_custom_call.1} parent=60 // pred_check_branch
            %706 = sbr.rel (%p704) target = $region67
          $region66: #{tpu_custom_call.1} parent=60 // pred_region
            %s707 = sadd.s32 %s374, %s682
            %s708 = sadd.s32 %s707, 1
            %s709 = ssub.s32 1, %s696
            %s710 = smul.u32 %s708, 2
            %s711 = smul.addr %s710, 64
            %s712 = scalar_lea.hbm %s7, %s711
            %s713 = smul.addr %s709, 8
            %s714 = scalar_lea.vmem [#allocation2], %s713
            %s715 = scalar_lea.sflag [#allocation3], %s709
            // Predicated region
            $region68: #{tpu_custom_call.1} parent=66 // pred_check
              _
            $region69: #{tpu_custom_call.1} parent=66 // pred_check_branch
              %717 = sbr.rel target = $region71
            $region70: #{tpu_custom_call.1} parent=66 // pred_region
              %718 = sst [smem:[#allocation14]] [#allocation17]
              %719 = sst [smem:[#allocation15]] [#allocation16]
            $region71: #{tpu_custom_call.1} parent=66 // pred_fallthru
              _
            %721 = shalt.err (0)
            %s723 = sshll.u32 %s714, 4
            %s724 = int_to_ptr.vmem [resolvable:$true] %s723
            %726 = dma.hbm_to_vmem [thread:$0]  %s712, 128, %s724, %s715
          $region67: #{tpu_custom_call.1} parent=60 // pred_fallthru
            _
          %v728 = vlaneseq
          %v729 = vshrl.u32 %v728, 7
          %v730 = vsub.s32 0, %v729
          %v731 = vrot.slane %v674, %v730
          %v734 = vsel %vm402, %v689, 0
          %v737 = vsel %vm402, %v690, 0
          %739 = vmatprep.subr.mxu0 0.0
          %740 = vmatpush1.msra.mxu0 %v660
          %741 = vmatprep.subr.mxu0 0.0
          %742 = vmatpush1.msra.mxu0 %v661
          %743 = vmatprep.subr.mxu0 0.0
          %744 = vmatpush1.msra.mxu0 %v662
          %745 = vmatprep.subr.mxu0 0.0
          %746 = vmatpush1.msra.mxu0 %v663
          %747 = vmatprep.subr.mxu0 0.0
          %748 = vmatpush1.msra.mxu0 0.0
          %749 = vmatprep.subr.mxu0 0.0
          %750 = vmatpush1.msra.mxu0 0.0
          %751 = vmatprep.subr.mxu0 0.0
          %752 = vmatpush1.msra.mxu0 0.0
          %753 = vmatprep.subr.mxu0 0.0
          %754 = vmatpush1.msra.mxu0 0.0
          %755 = vmatprep.subr.mxu0 0.0
          %756 = vmatpush1.msra.mxu0 0.0
          %757 = vmatprep.subr.mxu0 0.0
          %758 = vmatpush1.msra.mxu0 0.0
          %759 = vmatprep.subr.mxu0 0.0
          %760 = vmatpush1.msra.mxu0 0.0
          %761 = vmatprep.subr.mxu0 0.0
          %762 = vmatpush1.msra.mxu0 0.0
          %763 = vmatprep.subr.mxu0 0.0
          %764 = vmatpush1.msra.mxu0 0.0
          %765 = vmatprep.subr.mxu0 0.0
          %766 = vmatpush1.msra.mxu0 0.0
          %767 = vmatprep.subr.mxu0 0.0
          %768 = vmatpush1.msra.mxu0 0.0
          %769 = vmatprep.subr.mxu0 0.0
          %770 = vmatpush1.msra.mxu0 0.0
          %771 = vmatprep.subr.mxu0 0.0
          %772 = vmatpush1.msra.mxu0 0.0
          %773 = vmatprep.subr.mxu0 0.0
          %774 = vmatpush1.msra.mxu0 0.0
          %775 = vmatprep.subr.mxu0 0.0
          %776 = vmatpush1.msra.mxu0 0.0
          %777 = vmatprep.subr.mxu0 0.0
          %778 = vmatpush1.msra.mxu0 0.0
          %779 = vmatprep.subr.mxu0 0.0
          %780 = vmatpush1.msra.mxu0 0.0
          %781 = vmatprep.subr.mxu0 0.0
          %782 = vmatpush1.msra.mxu0 0.0
          %783 = vmatprep.subr.mxu0 0.0
          %784 = vmatpush1.msra.mxu0 0.0
          %785 = vmatprep.subr.mxu0 0.0
          %786 = vmatpush1.msra.mxu0 0.0
          %787 = vmatprep.subr.mxu0 0.0
          %788 = vmatpush1.msra.mxu0 0.0
          %789 = vmatprep.subr.mxu0 0.0
          %790 = vmatpush1.msra.mxu0 0.0
          %791 = vmatprep.subr.mxu0 0.0
          %792 = vmatpush1.msra.mxu0 0.0
          %793 = vmatprep.subr.mxu0 0.0
          %794 = vmatpush1.msra.mxu0 0.0
          %795 = vmatprep.subr.mxu0 0.0
          %796 = vmatpush1.msra.mxu0 0.0
          %797 = vmatprep.subr.mxu0 0.0
          %798 = vmatpush1.msra.mxu0 0.0
          %799 = vmatprep.subr.mxu0 0.0
          %800 = vmatpush1.msra.mxu0 0.0
          %801 = vmatprep.subr.mxu0 0.0
          %802 = vmatpush1.msra.mxu0 0.0
          %803 = vmatprep.mubr.f32.mxu0 0.0
          %804 = vmatmul.mubr.f32.gmra.mrb[0].mxu0 %v734
          %v805 = vpop.f32.mrb[0].mxu0
          %v806 = vadd.f32 %v731, %v805
          %v807 = vpop.f32.mrb[0].mxu0
          %808 = vmatprep.mubr.f32.mxu0 0.0
          %809 = vmatmul.mubr.f32.gmra.mrb[0].mxu0 %v737
          %v810 = vpop.f32.mrb[0].mxu0
          %v811 = vadd.f32 %v731, %v810
          %v812 = vpop.f32.mrb[0].mxu0
          %813 = vdwg.mxu0
          %v815 = vlaneseq
          %v816 = vshrl.u32 %v815, 7
          %v817 = vsub.s32 0, %v816
          %v818 = vrot.slane %v676, %v817
          %820 = vmatprep.subr.mxu0 0.0
          %821 = vmatpush1.msra.mxu0 %v665
          %822 = vmatprep.subr.mxu0 0.0
          %823 = vmatpush1.msra.mxu0 %v666
          %824 = vmatprep.subr.mxu0 0.0
          %825 = vmatpush1.msra.mxu0 %v667
          %826 = vmatprep.subr.mxu0 0.0
          %827 = vmatpush1.msra.mxu0 %v668
          %828 = vmatprep.subr.mxu0 0.0
          %829 = vmatpush1.msra.mxu0 0.0
          %830 = vmatprep.subr.mxu0 0.0
          %831 = vmatpush1.msra.mxu0 0.0
          %832 = vmatprep.subr.mxu0 0.0
          %833 = vmatpush1.msra.mxu0 0.0
          %834 = vmatprep.subr.mxu0 0.0
          %835 = vmatpush1.msra.mxu0 0.0
          %836 = vmatprep.subr.mxu0 0.0
          %837 = vmatpush1.msra.mxu0 0.0
          %838 = vmatprep.subr.mxu0 0.0
          %839 = vmatpush1.msra.mxu0 0.0
          %840 = vmatprep.subr.mxu0 0.0
          %841 = vmatpush1.msra.mxu0 0.0
          %842 = vmatprep.subr.mxu0 0.0
          %843 = vmatpush1.msra.mxu0 0.0
          %844 = vmatprep.subr.mxu0 0.0
          %845 = vmatpush1.msra.mxu0 0.0
          %846 = vmatprep.subr.mxu0 0.0
          %847 = vmatpush1.msra.mxu0 0.0
          %848 = vmatprep.subr.mxu0 0.0
          %849 = vmatpush1.msra.mxu0 0.0
          %850 = vmatprep.subr.mxu0 0.0
          %851 = vmatpush1.msra.mxu0 0.0
          %852 = vmatprep.subr.mxu0 0.0
          %853 = vmatpush1.msra.mxu0 0.0
          %854 = vmatprep.subr.mxu0 0.0
          %855 = vmatpush1.msra.mxu0 0.0
          %856 = vmatprep.subr.mxu0 0.0
          %857 = vmatpush1.msra.mxu0 0.0
          %858 = vmatprep.subr.mxu0 0.0
          %859 = vmatpush1.msra.mxu0 0.0
          %860 = vmatprep.subr.mxu0 0.0
          %861 = vmatpush1.msra.mxu0 0.0
          %862 = vmatprep.subr.mxu0 0.0
          %863 = vmatpush1.msra.mxu0 0.0
          %864 = vmatprep.subr.mxu0 0.0
          %865 = vmatpush1.msra.mxu0 0.0
          %866 = vmatprep.subr.mxu0 0.0
          %867 = vmatpush1.msra.mxu0 0.0
          %868 = vmatprep.subr.mxu0 0.0
          %869 = vmatpush1.msra.mxu0 0.0
          %870 = vmatprep.subr.mxu0 0.0
          %871 = vmatpush1.msra.mxu0 0.0
          %872 = vmatprep.subr.mxu0 0.0
          %873 = vmatpush1.msra.mxu0 0.0
          %874 = vmatprep.subr.mxu0 0.0
          %875 = vmatpush1.msra.mxu0 0.0
          %876 = vmatprep.subr.mxu0 0.0
          %877 = vmatpush1.msra.mxu0 0.0
          %878 = vmatprep.subr.mxu0 0.0
          %879 = vmatpush1.msra.mxu0 0.0
          %880 = vmatprep.subr.mxu0 0.0
          %881 = vmatpush1.msra.mxu0 0.0
          %882 = vmatprep.subr.mxu0 0.0
          %883 = vmatpush1.msra.mxu0 0.0
          %884 = vmatprep.mubr.f32.mxu0 0.0
          %885 = vmatmul.mubr.f32.gmra.mrb[0].mxu0 %v734
          %v886 = vpop.f32.mrb[0].mxu0
          %v887 = vadd.f32 %v818, %v886
          %v888 = vpop.f32.mrb[0].mxu0
          %889 = vmatprep.mubr.f32.mxu0 0.0
          %890 = vmatmul.mubr.f32.gmra.mrb[0].mxu0 %v737
          %v891 = vpop.f32.mrb[0].mxu0
          %v892 = vadd.f32 %v818, %v891
          %v893 = vpop.f32.mrb[0].mxu0
          %894 = vdwg.mxu0
          %v896 = vlaneseq
          %v897 = vshrl.u32 %v896, 7
          %v898 = vsub.s32 0, %v897
          %v899 = vrot.slane %v678, %v898
          %901 = vmatprep.subr.mxu0 0.0
          %902 = vmatpush1.msra.mxu0 %v670
          %903 = vmatprep.subr.mxu0 0.0
          %904 = vmatpush1.msra.mxu0 %v671
          %905 = vmatprep.subr.mxu0 0.0
          %906 = vmatpush1.msra.mxu0 %v672
          %907 = vmatprep.subr.mxu0 0.0
          %908 = vmatpush1.msra.mxu0 %v673
          %909 = vmatprep.subr.mxu0 0.0
          %910 = vmatpush1.msra.mxu0 0.0
          %911 = vmatprep.subr.mxu0 0.0
          %912 = vmatpush1.msra.mxu0 0.0
          %913 = vmatprep.subr.mxu0 0.0
          %914 = vmatpush1.msra.mxu0 0.0
          %915 = vmatprep.subr.mxu0 0.0
          %916 = vmatpush1.msra.mxu0 0.0
          %917 = vmatprep.subr.mxu0 0.0
          %918 = vmatpush1.msra.mxu0 0.0
          %919 = vmatprep.subr.mxu0 0.0
          %920 = vmatpush1.msra.mxu0 0.0
          %921 = vmatprep.subr.mxu0 0.0
          %922 = vmatpush1.msra.mxu0 0.0
          %923 = vmatprep.subr.mxu0 0.0
          %924 = vmatpush1.msra.mxu0 0.0
          %925 = vmatprep.subr.mxu0 0.0
          %926 = vmatpush1.msra.mxu0 0.0
          %927 = vmatprep.subr.mxu0 0.0
          %928 = vmatpush1.msra.mxu0 0.0
          %929 = vmatprep.subr.mxu0 0.0
          %930 = vmatpush1.msra.mxu0 0.0
          %931 = vmatprep.subr.mxu0 0.0
          %932 = vmatpush1.msra.mxu0 0.0
          %933 = vmatprep.subr.mxu0 0.0
          %934 = vmatpush1.msra.mxu0 0.0
          %935 = vmatprep.subr.mxu0 0.0
          %936 = vmatpush1.msra.mxu0 0.0
          %937 = vmatprep.subr.mxu0 0.0
          %938 = vmatpush1.msra.mxu0 0.0
          %939 = vmatprep.subr.mxu0 0.0
          %940 = vmatpush1.msra.mxu0 0.0
          %941 = vmatprep.subr.mxu0 0.0
          %942 = vmatpush1.msra.mxu0 0.0
          %943 = vmatprep.subr.mxu0 0.0
          %944 = vmatpush1.msra.mxu0 0.0
          %945 = vmatprep.subr.mxu0 0.0
          %946 = vmatpush1.msra.mxu0 0.0
          %947 = vmatprep.subr.mxu0 0.0
          %948 = vmatpush1.msra.mxu0 0.0
          %949 = vmatprep.subr.mxu0 0.0
          %950 = vmatpush1.msra.mxu0 0.0
          %951 = vmatprep.subr.mxu0 0.0
          %952 = vmatpush1.msra.mxu0 0.0
          %953 = vmatprep.subr.mxu0 0.0
          %954 = vmatpush1.msra.mxu0 0.0
          %955 = vmatprep.subr.mxu0 0.0
          %956 = vmatpush1.msra.mxu0 0.0
          %957 = vmatprep.subr.mxu0 0.0
          %958 = vmatpush1.msra.mxu0 0.0
          %959 = vmatprep.subr.mxu0 0.0
          %960 = vmatpush1.msra.mxu0 0.0
          %961 = vmatprep.subr.mxu0 0.0
          %962 = vmatpush1.msra.mxu0 0.0
          %963 = vmatprep.subr.mxu0 0.0
          %964 = vmatpush1.msra.mxu0 0.0
          %965 = vmatprep.mubr.f32.mxu0 0.0
          %966 = vmatmul.mubr.f32.gmra.mrb[0].mxu0 %v734
          %v967 = vpop.f32.mrb[0].mxu0
          %v968 = vadd.f32 %v899, %v967
          %v969 = vpop.f32.mrb[0].mxu0
          %970 = vmatprep.mubr.f32.mxu0 0.0
          %971 = vmatmul.mubr.f32.gmra.mrb[0].mxu0 %v737
          %v972 = vpop.f32.mrb[0].mxu0
          %v973 = vadd.f32 %v899, %v972
          %v974 = vpop.f32.mrb[0].mxu0
          %975 = vdwg.mxu0
          %v976 = vadd.f32 %v476, %v806
          %v977 = vadd.f32 %v481, %v811
          %v978 = vxor.u32 %v976, 2147483648
          %v979 = vxor.u32 %v977, 2147483648
          %v980 = vmul.f32 %v978, 1.442695
          %v981 = vpow.pop %v980
          %v982 = vmul.f32 %v979, 1.442695
          %v983 = vpow.pop %v982
          %v984 = vadd.f32 %v981, 1.0
          %v985 = vadd.f32 %v983, 1.0
          %v986 = vrcp.pop %v984
          %v987 = vmul.f32 1.0, %v986
          %v988 = vrcp.pop %v985
          %v989 = vmul.f32 1.0, %v988
          %v990 = vadd.f32 %v564, %v887
          %v991 = vadd.f32 %v569, %v892
          %v992 = vxor.u32 %v990, 2147483648
          %v993 = vxor.u32 %v991, 2147483648
          %v994 = vmul.f32 %v992, 1.442695
          %v995 = vpow.pop %v994
          %v996 = vmul.f32 %v993, 1.442695
          %v997 = vpow.pop %v996
          %v998 = vadd.f32 %v995, 1.0
          %v999 = vadd.f32 %v997, 1.0
          %v1000 = vrcp.pop %v998
          %v1001 = vmul.f32 1.0, %v1000
          %v1002 = vrcp.pop %v999
          %v1003 = vmul.f32 1.0, %v1002
          %v1004 = vmul.f32 %v987, %v968
          %v1005 = vmul.f32 %v989, %v973
          %v1006 = vadd.f32 %v652, %v1004
          %v1007 = vadd.f32 %v657, %v1005
          %v1008 = vtanh.pop %v1006
          %v1009 = vtanh.pop %v1007
          %v1010 = vsub.f32 1.0, %v1001
          %v1011 = vsub.f32 1.0, %v1003
          %v1012 = vmul.f32 %v1010, %v1008
          %v1013 = vmul.f32 %v1011, %v1009
          %v1014 = vmul.f32 %v1001, %v689
          %v1015 = vmul.f32 %v1003, %v690
          %v1016 = vadd.f32 %v1012, %v1014
          %v1017 = vadd.f32 %v1013, %v1015
          %v1018 = vstv %s682
          %vm1019 = vcmp.eq.s32.totalorder %v679, %v1018
          %vm1020 = vcmp.eq.s32.totalorder %v680, %v1018
          %v1021 = vsel %vm1019, 1, 0
          %v1022 = vsel %vm1020, 1, 0
          %v1023 = vcvt.s32.f32 %v1021
          %v1024 = vcvt.s32.f32 %v1022
          %1026 = vset.pattern.permute.xlu0 0
          %1027 = vperm.xlu0 %1026, %v1023
          %v1028 = vpop.permute.xlu0 %1027
          %1031 = vset.pattern.permute.xlu0 0
          %1032 = vperm.xlu0 %1031, %v1024
          %v1033 = vpop.permute.xlu0 %1032
          %v1035 = vmul.f32 %v1028, %v1016
          %v1036 = vmul.f32 %v1033, %v1017
          %v1037 = vadd.f32 %v687, %v1035
          %v1038 = vadd.f32 %v688, %v1036
          %s1039 = smul.addr %s696, 8
          %s1040 = scalar_lea.vmem [#allocation2], %s1039
          %v1041 = vld [vmem:[%s1040] sm:$0xff]
          %v1042 = vpack.c.bf16 %v1038, %v1037
          %vm1043 = vcmask 130048
          %v1045 = vsel %vm1043, %v1041, 0
          %1047 = vmatprep.subr.bf16.mxu0 0
          %1048 = vmatpush1.bf16.msra.mxu0 %v1042
          %1049 = vmatprep.subr.bf16.mxu0 0
          %1050 = vmatpush1.bf16.msra.mxu0 0
          %1051 = vmatprep.subr.bf16.mxu0 0
          %1052 = vmatpush1.bf16.msra.mxu0 0
          %1053 = vmatprep.subr.bf16.mxu0 0
          %1054 = vmatpush1.bf16.msra.mxu0 0
          %1055 = vmatprep.subr.bf16.mxu0 0
          %1056 = vmatpush1.bf16.msra.mxu0 0
          %1057 = vmatprep.subr.bf16.mxu0 0
          %1058 = vmatpush1.bf16.msra.mxu0 0
          %1059 = vmatprep.subr.bf16.mxu0 0
          %1060 = vmatpush1.bf16.msra.mxu0 0
          %1061 = vmatprep.subr.bf16.mxu0 0
          %1062 = vmatpush1.bf16.msra.mxu0 0
          %1063 = vmatprep.subr.bf16.mxu0 0
          %1064 = vmatpush1.bf16.msra.mxu0 0
          %1065 = vmatprep.subr.bf16.mxu0 0
          %1066 = vmatpush1.bf16.msra.mxu0 0
          %1067 = vmatprep.subr.bf16.mxu0 0
          %1068 = vmatpush1.bf16.msra.mxu0 0
          %1069 = vmatprep.subr.bf16.mxu0 0
          %1070 = vmatpush1.bf16.msra.mxu0 0
          %1071 = vmatprep.subr.bf16.mxu0 0
          %1072 = vmatpush1.bf16.msra.mxu0 0
          %1073 = vmatprep.subr.bf16.mxu0 0
          %1074 = vmatpush1.bf16.msra.mxu0 0
          %1075 = vmatprep.subr.bf16.mxu0 0
          %1076 = vmatpush1.bf16.msra.mxu0 0
          %1077 = vmatprep.subr.bf16.mxu0 0
          %1078 = vmatpush1.bf16.msra.mxu0 0
          %1079 = vmatprep.mubr.bf16.mxu0 0
          %1080 = vmatmul.mubr.bf16.gmra.mrb[0].mxu0 %v1045
          %v1081 = vpop.f32.mrb[0].mxu0
          %v1082 = vadd.f32 0.0, %v1081
          %v1083 = vpop.f32.mrb[0].mxu0
          %v1084 = vpop.f32.mrb[0].mxu0
          %v1085 = vadd.f32 0.0, %v1084
          %v1086 = vpop.f32.mrb[0].mxu0
          %1087 = vdwg.mxu0
          %v1088 = vadd.f32 %v689, %v1082
          %v1089 = vadd.f32 %v690, %v1085
        $region61: #{tpu_custom_call.1} parent=43 // loop_footer
          %s684 = sadd.s32 %s682, 1
        $region62: #{tpu_custom_call.1} parent=43 // loop_footer_branch
          %681 = sbr.rel target = $region58
        $region63: #{tpu_custom_call.1} parent=43 // loop_exit
          _
        %1090 = vst.msk [vmem:[%s358] sm:$0xff] %vm402, %v687
        %1091 = vst.msk [vmem:[%s358 + $0x8] sm:$0xff] %vm402, %v688
        %s1092 = sand.u32 %s193, 1
        %s1093 = scalar_lea.sflag [#allocation8], %s1092
        %s1094 = sand.u32 %s193, 1
        %s1095 = smul.addr %s1094, 16
        %s1096 = scalar_lea.vmem [#allocation11], %s1095
        // Predicated region
        $region72: #{tpu_custom_call.1} parent=43 // pred_check
          %p1097 = pneg %p203
        $region73: #{tpu_custom_call.1} parent=43 // pred_check_branch
          %1099 = sbr.rel (%p1097) target = $region75
        $region74: #{tpu_custom_call.1} parent=43 // pred_region
          %s1101 = ssub.s32 256, 256
          %1102 = vsyncadd %s1093, %s1101
          %s1103 = smul.addr %s34, 2
          %s1104 = smul.addr %s1103, 128
          %s1105 = scalar_lea.hbm %s8, %s1104
          %s1106 = sshll.u32 %s1096, 4
          %s1107 = int_to_ptr.vmem [resolvable:$true] %s1106
          %1112 = dma.vmem_to_hbm [thread:$0]  %s1107, 256, %s1105, %s1093, 128, 128, 8
        $region75: #{tpu_custom_call.1} parent=43 // pred_fallthru
          _
      $region44: #{tpu_custom_call.1} parent=5 // pred_fallthru
        _
      %p1113 = scmp.le.s32.totalorder 2, %s29
      // Predicated region
      $region76: #{tpu_custom_call.1} parent=5 // pred_check
        %p1114 = pneg %p1113
      $region77: #{tpu_custom_call.1} parent=5 // pred_check_branch
        %1116 = sbr.rel (%p1114) target = $region79
      $region78: #{tpu_custom_call.1} parent=5 // pred_region
        %s1117 = ssub.s32 %s29, 2
        // Predicated region
        $region80: #{tpu_custom_call.1} parent=78 // pred_check
          %p1118 = pneg %p209
        $region81: #{tpu_custom_call.1} parent=78 // pred_check_branch
          %1120 = sbr.rel (%p1118) target = $region83
        $region82: #{tpu_custom_call.1} parent=78 // pred_region
          %s1121 = sand.u32 %s194, 1
          %s1122 = scalar_lea.sflag [#allocation8], %s1121
          %s1123 = sand.u32 %s194, 1
          %s1124 = smul.addr %s1123, 16
          %s1125 = scalar_lea.vmem [#allocation11], %s1124
          %1126 = dma.done %s1122, 256
        $region83: #{tpu_custom_call.1} parent=78 // pred_fallthru
          _
      $region79: #{tpu_custom_call.1} parent=5 // pred_fallthru
        _
    $region6: #{tpu_custom_call.1} parent=1 // loop_footer
      %s33 = sadd.s32 1, %s29
    $region7: #{tpu_custom_call.1} parent=1 // loop_footer_branch
      %28 = sbr.rel target = $region3
    $region8: #{tpu_custom_call.1} parent=1 // loop_exit
      _
    %1127 = vsyncpa [#allocation7], 1
    %s1128 = scalar_lea.sflag [#allocation7], 1
    %1129 = vsyncpa %s1128, 1
    %1130 = vsyncpa [#allocation10], 1
    %s1131 = scalar_lea.sflag [#allocation10], 1
    %1132 = vsyncpa %s1131, 1
    %1133 = vsyncpa [#allocation8], 1
    %s1134 = scalar_lea.sflag [#allocation8], 1
    %1135 = vsyncpa %s1134, 1
  %1136 = vsyncmov [#allocation3]
  %s1137 = vpop.sfrf %1136
  %p1138 = scmp.eq.s32.totalorder %s1137, 0
  %p1139 = pneg %p1138
  %1141 = shalt.err (%p1139)
  %s1142 = scalar_lea.sflag [#allocation3], 1
  %1143 = vsyncmov %s1142
  %s1144 = vpop.sfrf %1143
  %p1145 = scmp.eq.s32.totalorder %s1144, 0
  %p1146 = pneg %p1145
  %1148 = shalt.err (%p1146)

</llo_original>
